<compile_context>
chip_gen: v7x
topology: tpu7x:2x2x1
jax: 0.10.0
libtpu: 0.0.40
codegen_flags: <defaults>
</compile_context>

<pallas_src>
import jax
import jax.numpy as jnp
from jax import lax
from jax.experimental import pallas as pl
from jax.experimental.pallas import tpu as pltpu

CHAR_CONV_FILTERS = 25
CHAR_CONV_WINDOW_SIZE = 5
CHAR_EMBEDDINGS_SIZE = 50
CHAR_VOCAB = 128
PAD = CHAR_CONV_WINDOW_SIZE  # nn.Conv1d(..., padding=CHAR_CONV_WINDOW_SIZE)


def _round_up(x, m):
    return ((x + m - 1) // m) * m


def char_cnn_kernel(ids_ref, wf_ref, b_ref, o_ref):
    # ids_ref: (TB*L_out_pad, K) int8 tap table; -1 = zero-padding sentinel.
    # wf_ref : (n_mat, K*128, F_pad) bf16; row k*128+v = emb_table[v] @ conv_w[:, :, k].T,
    #          split into hi/lo bf16 parts when n_mat == 2 (near-f32 accuracy).
    # b_ref  : (1, F_pad) f32 zero-padded conv bias.
    # o_ref  : (TB, F_pad) f32 pooled output (lane-dense).
    m, n_taps = ids_ref.shape
    n_mat, depth, f_pad = wf_ref.shape
    vocab = depth // n_taps
    tb = o_ref.shape[0]
    l_win = m // tb                     # L_out_pad (multiple of 8)

    ids = ids_ref[...].astype(jnp.int32)                        # (m, K) widened once
    iota_v = lax.broadcasted_iota(jnp.int32, (1, vocab), 1)     # (1, 128), broadcast in ==

    # One 128-lane one-hot slab per tap, lane-concatenated into a single wide bf16 LHS.
    # A sentinel id (-1) matches nothing -> all-zero row == zero conv padding.
    slabs = [(ids[:, k:k + 1] == iota_v).astype(jnp.bfloat16) for k in range(n_taps)]
    one_hot = jnp.concatenate(slabs, axis=-1)                   # (m, K*128) bf16

    # Single fused contraction per weight part (MXU accumulates over the K*128 depth).
    acc = jnp.dot(one_hot, wf_ref[0], preferred_element_type=jnp.float32)
    for i in range(1, n_mat):                                   # lo-correction matmul
        acc = acc + jnp.dot(one_hot, wf_ref[i], preferred_element_type=jnp.float32)

    # AdaptiveMaxPool1d(1) over the l_win window positions of each word, then the
    # deferred bias + ReLU on the small pooled (tb, F_pad) result.
    pooled = jnp.max(acc.reshape(tb, l_win, f_pad), axis=1)     # (tb, F_pad)
    o_ref[...] = jnp.maximum(pooled + b_ref[...], 0.0)


def _phys_vmem_bytes():
    # Physical VMEM per core: 128 MiB on v5e/v6e, 64 MiB on v7x.  Conservative fallback.
    try:
        info = pltpu.get_tpu_info()
        v = int(getattr(info, "vmem_capacity_bytes", 0) or 0)
        if v > 0:
            return v
    except Exception:
        pass
    return 64 * 1024 * 1024


def _est_vmem_bytes(tb, l_win, depth, f_pad, n_mat):
    # Rough per-step VMEM footprint: pipeline buffers + kernel intermediates.
    m = tb * l_win
    ids_bufs = 2 * m * 128                     # int8 block, lanes padded to 128, x2 buffers
    wf_bufs = 2 * n_mat * depth * f_pad * 2    # bf16 weights, x2 buffers
    out_bufs = 2 * tb * f_pad * 4
    one_hot = 2 * m * depth * 2                # bf16 slabs + concatenated LHS
    int_tmp = 2 * m * 128 * 4                  # widened ids + broadcast/compare temporary
    acc = 2 * m * f_pad * 4                    # matmul results / accumulator
    return ids_bufs + wf_bufs + out_bufs + one_hot + int_tmp + acc


def char_cnn_forward(chars, emb_table, conv_w, conv_b, *, tb_max=1024, hi_lo=True):
    """chars: (B, L) ints in [0, 128); emb_table: (128, C); conv_w: (F, C, K) in torch
    Conv1d layout; conv_b: (F,).  Returns (B, F) f32 == CharCNN.forward output."""
    B, L = chars.shape
    V, C = emb_table.shape
    F, _, K = conv_w.shape
    assert V == CHAR_VOCAB, "one-hot LHS assumes a 128-entry char vocabulary"
    L_out = L + 2 * PAD - K + 1
    L_out_pad = _round_up(L_out, 8)      # sublane-aligned window count per word
    F_pad = _round_up(F, 128)            # lane-dense output filters
    depth = K * V
    n_mat = 2 if hi_lo else 1

    if L_out_pad != L_out:
        # Filler window rows are all-sentinel and contribute a raw conv value of 0,
        # which the genuine all-padding window at t=0 already contributes (it exists
        # because PAD >= K), so the per-word max is unchanged.
        assert PAD >= K, "window filler rows need an all-padding window in the max"

    # --- grid sizing: even step count (v7x: 2 TCs); tile size from the VMEM budget ---
    phys_vmem = _phys_vmem_bytes()
    vmem_limit = min(64 * 1024 * 1024, int(phys_vmem * 0.75))  # 64 MB v5e/v6e, 48 MB v7x
    tb_cap = 8
    while (tb_cap * 2 <= tb_max and
           _est_vmem_bytes(2 * tb_cap, L_out_pad, depth, F_pad, n_mat)
           <= int(0.7 * vmem_limit)):
        tb_cap *= 2

    if B <= 8:
        tb = 8
    else:
        n_big = -(-B // tb_cap)          # ceil(B / tb_cap)
        n_steps = 2 * (-(-n_big // 2))   # round the step count up to even
        tb = _round_up(-(-B // n_steps), 8)
    B_pad = _round_up(B, tb)
    if (B_pad // tb) > 1 and (B_pad // tb) % 2 == 1:
        B_pad += tb                      # keep the step count even for v7x's two TCs
    grid = (B_pad // tb,)

    # --- tiny int8 tap table: im2col of padded char ids with a -1 sentinel ---
    cp = jnp.pad(chars.astype(jnp.int32), ((0, B_pad - B), (PAD, PAD)),
                 constant_values=-1)                                     # (B_pad, L+2*PAD)
    taps = jnp.stack([cp[:, k:k + L_out] for k in range(K)], axis=-1)    # (B_pad, L_out, K)
    taps = jnp.pad(taps, ((0, 0), (0, L_out_pad - L_out), (0, 0)),
                   constant_values=-1)                                   # (B_pad, L_out_pad, K)
    taps = taps.reshape(B_pad * L_out_pad, K).astype(jnp.int8)

    # --- fold the embedding table into the conv weights; hi/lo bf16 split ---
    w_kcf = jnp.transpose(conv_w, (2, 1, 0)).astype(jnp.float32)         # (K, C, F)
    wf = jnp.einsum('vc,kcf->kvf', emb_table.astype(jnp.float32), w_kcf,
                    precision='highest')                                 # (K, 128, F)
    wf = jnp.pad(wf, ((0, 0), (0, 0), (0, F_pad - F))).reshape(depth, F_pad)
    wf_hi = wf.astype(jnp.bfloat16)
    if hi_lo:
        wf_lo = (wf - wf_hi.astype(jnp.float32)).astype(jnp.bfloat16)
        wf_pack = jnp.stack([wf_hi, wf_lo], axis=0)                      # (2, K*128, F_pad)
    else:
        wf_pack = wf_hi[None]                                            # (1, K*128, F_pad)
    bias = jnp.pad(conv_b.astype(jnp.float32), (0, F_pad - F)).reshape(1, F_pad)

    m_blk = tb * L_out_pad
    out = pl.pallas_call(
        char_cnn_kernel,
        out_shape=jax.ShapeDtypeStruct((B_pad, F_pad), jnp.float32),
        grid_spec=pltpu.PrefetchScalarGridSpec(
            num_scalar_prefetch=0,
            grid=grid,
            in_specs=[
                pl.BlockSpec((m_blk, K), lambda i: (i, 0)),
                pl.BlockSpec((n_mat, depth, F_pad), lambda i: (0, 0, 0)),
                pl.BlockSpec((1, F_pad), lambda i: (0, 0)),
            ],
            out_specs=pl.BlockSpec((tb, F_pad), lambda i: (i, 0)),
        ),
        compiler_params=pltpu.CompilerParams(
            dimension_semantics=("parallel",),
            vmem_limit_bytes=vmem_limit),
    )(taps, wf_pack, bias)
    return out[:B, :F]


def char_cnn_reference(chars, emb_table, conv_w, conv_b):
    # Pure-JAX reference matching PyTorch CharCNN.forward semantics.
    x = emb_table[chars].astype(jnp.float32)           # (B, L, C)
    x = jnp.pad(x, ((0, 0), (PAD, PAD), (0, 0)))       # (B, L_pad, C)
    B, Lp, C = x.shape
    F, _, K = conv_w.shape
    L_out = Lp - K + 1
    patches = jnp.stack([x[:, k:k + L_out, :] for k in range(K)], axis=-1)  # (B,Lout,C,K)
    out = jnp.einsum('blck,fck->blf', patches, conv_w.astype(jnp.float32),
                     precision='highest') + conv_b
    out = jnp.maximum(out, 0.0)
    return jnp.max(out, axis=1)                        # (B, F)


if __name__ == "__main__":
    key = jax.random.PRNGKey(0)
    k_chars, k_emb, k_w, k_b = jax.random.split(key, 4)

    B, L = 2, 8  # batch of 2 "words", 8 characters each
    chars = jax.random.randint(k_chars, (B, L), 0, 128, dtype=jnp.int32)

    emb_table = 0.1 * jax.random.normal(
        k_emb, (128, CHAR_EMBEDDINGS_SIZE), dtype=jnp.float32)
    conv_w = 0.1 * jax.random.normal(
        k_w, (CHAR_CONV_FILTERS, CHAR_EMBEDDINGS_SIZE, CHAR_CONV_WINDOW_SIZE),
        dtype=jnp.float32)
    conv_b = 0.1 * jax.random.normal(
        k_b, (CHAR_CONV_FILTERS,), dtype=jnp.float32)

    out = jax.block_until_ready(char_cnn_forward(chars, emb_table, conv_w, conv_b))
    ref = char_cnn_reference(chars, emb_table, conv_w, conv_b)
    assert out.shape == (B, CHAR_CONV_FILTERS)
    assert jnp.allclose(out, ref, atol=1e-3, rtol=1e-3), "mismatch vs reference (small)"

    # Larger batch: exercises the multi-step (even) parallel grid and padding paths.
    B2 = 400
    chars2 = jax.random.randint(jax.random.PRNGKey(1), (B2, L), 0, 128, dtype=jnp.int32)
    out2 = jax.block_until_ready(char_cnn_forward(chars2, emb_table, conv_w, conv_b))
    ref2 = char_cnn_reference(chars2, emb_table, conv_w, conv_b)
    assert out2.shape == (B2, CHAR_CONV_FILTERS)
    assert jnp.allclose(out2, ref2, atol=1e-3, rtol=1e-3), "mismatch vs reference (batched)"

    print("KERNEL_OK")
</pallas_src>

<mosaic_0001>
module attributes {stable_mosaic.version = 11 : i64} {
  func.func @char_cnn_kernel(%arg0: i32, %arg1: memref<128x5xi8, #tpu.memory_space<vmem>>, %arg2: memref<2x640x128xbf16, #tpu.memory_space<vmem>>, %arg3: memref<1x128xf32, #tpu.memory_space<vmem>>, %arg4: memref<8x128xf32, #tpu.memory_space<vmem>>) attributes {dimension_semantics = [#tpu.dimension_semantics<parallel>], iteration_bounds = array<i64: 1>, scalar_prefetch = 0 : i64, scratch_operands = 0 : i64, tpu.core_type = #tpu.core_type<tc>, window_params = [{transform_indices = @transform_0, window_bounds = array<i64: 128, 5>}, {pipeline_mode = #tpu.pipeline_mode<synchronous>, transform_indices = @transform_1, window_bounds = array<i64: 2, 640, 128>}, {pipeline_mode = #tpu.pipeline_mode<synchronous>, transform_indices = @transform_2, window_bounds = array<i64: 1, 128>}, {transform_indices = @transform_3, window_bounds = array<i64: 8, 128>}]} {
    %c0 = arith.constant 0 : index
    %c0_0 = arith.constant 0 : index
    %0 = vector.load %arg1[%c0, %c0_0] : memref<128x5xi8, #tpu.memory_space<vmem>>, vector<128x5xi8>
    %1 = arith.extsi %0 : vector<128x5xi8> to vector<128x5xi32>
    %2 = tpu.iota {dimensions = array<i32: 1>} : vector<1x128xi32>
    %3 = vector.extract_strided_slice %1 {offsets = [0, 0], sizes = [128, 1], strides = [1, 1]} : vector<128x5xi32> to vector<128x1xi32>
    %4 = vector.broadcast %3 : vector<128x1xi32> to vector<128x128xi32>
    %5 = vector.broadcast %2 : vector<1x128xi32> to vector<128x128xi32>
    %6 = arith.cmpi eq, %4, %5 : vector<128x128xi32>
    %7 = arith.extui %6 : vector<128x128xi1> to vector<128x128xi32>
    %8 = arith.sitofp %7 : vector<128x128xi32> to vector<128x128xf32>
    %9 = arith.truncf %8 : vector<128x128xf32> to vector<128x128xbf16>
    %10 = vector.extract_strided_slice %1 {offsets = [0, 1], sizes = [128, 1], strides = [1, 1]} : vector<128x5xi32> to vector<128x1xi32>
    %11 = vector.broadcast %10 : vector<128x1xi32> to vector<128x128xi32>
    %12 = vector.broadcast %2 : vector<1x128xi32> to vector<128x128xi32>
    %13 = arith.cmpi eq, %11, %12 : vector<128x128xi32>
    %14 = arith.extui %13 : vector<128x128xi1> to vector<128x128xi32>
    %15 = arith.sitofp %14 : vector<128x128xi32> to vector<128x128xf32>
    %16 = arith.truncf %15 : vector<128x128xf32> to vector<128x128xbf16>
    %17 = vector.extract_strided_slice %1 {offsets = [0, 2], sizes = [128, 1], strides = [1, 1]} : vector<128x5xi32> to vector<128x1xi32>
    %18 = vector.broadcast %17 : vector<128x1xi32> to vector<128x128xi32>
    %19 = vector.broadcast %2 : vector<1x128xi32> to vector<128x128xi32>
    %20 = arith.cmpi eq, %18, %19 : vector<128x128xi32>
    %21 = arith.extui %20 : vector<128x128xi1> to vector<128x128xi32>
    %22 = arith.sitofp %21 : vector<128x128xi32> to vector<128x128xf32>
    %23 = arith.truncf %22 : vector<128x128xf32> to vector<128x128xbf16>
    %24 = vector.extract_strided_slice %1 {offsets = [0, 3], sizes = [128, 1], strides = [1, 1]} : vector<128x5xi32> to vector<128x1xi32>
    %25 = vector.broadcast %24 : vector<128x1xi32> to vector<128x128xi32>
    %26 = vector.broadcast %2 : vector<1x128xi32> to vector<128x128xi32>
    %27 = arith.cmpi eq, %25, %26 : vector<128x128xi32>
    %28 = arith.extui %27 : vector<128x128xi1> to vector<128x128xi32>
    %29 = arith.sitofp %28 : vector<128x128xi32> to vector<128x128xf32>
    %30 = arith.truncf %29 : vector<128x128xf32> to vector<128x128xbf16>
    %31 = vector.extract_strided_slice %1 {offsets = [0, 4], sizes = [128, 1], strides = [1, 1]} : vector<128x5xi32> to vector<128x1xi32>
    %32 = vector.broadcast %31 : vector<128x1xi32> to vector<128x128xi32>
    %33 = vector.broadcast %2 : vector<1x128xi32> to vector<128x128xi32>
    %34 = arith.cmpi eq, %32, %33 : vector<128x128xi32>
    %35 = arith.extui %34 : vector<128x128xi1> to vector<128x128xi32>
    %36 = arith.sitofp %35 : vector<128x128xi32> to vector<128x128xf32>
    %37 = arith.truncf %36 : vector<128x128xf32> to vector<128x128xbf16>
    %38 = tpu.concatenate %9, %16, %23, %30, %37 in 1 : vector<128x128xbf16>, vector<128x128xbf16>, vector<128x128xbf16>, vector<128x128xbf16>, vector<128x128xbf16> -> vector<128x640xbf16>
    %c0_1 = arith.constant 0 : index
    %c0_2 = arith.constant 0 : index
    %c0_3 = arith.constant 0 : index
    %39 = vector.load %arg2[%c0_1, %c0_2, %c0_3] : memref<2x640x128xbf16, #tpu.memory_space<vmem>>, vector<1x640x128xbf16>
    %40 = vector.shape_cast %39 : vector<1x640x128xbf16> to vector<640x128xbf16>
    %cst = arith.constant dense<0.000000e+00> : vector<128x128xf32>
    %41 = tpu.matmul %38, %40, %cst {dimension_numbers = #tpu.dot_dimension_numbers<[1], [0], [0], [1], [0, 0, 1, 1], [], []>} : vector<128x640xbf16>, vector<640x128xbf16>, vector<128x128xf32> -> vector<128x128xf32>
    %c1 = arith.constant 1 : index
    %c0_4 = arith.constant 0 : index
    %c0_5 = arith.constant 0 : index
    %42 = vector.load %arg2[%c1, %c0_4, %c0_5] : memref<2x640x128xbf16, #tpu.memory_space<vmem>>, vector<1x640x128xbf16>
    %43 = vector.shape_cast %42 : vector<1x640x128xbf16> to vector<640x128xbf16>
    %cst_6 = arith.constant dense<0.000000e+00> : vector<128x128xf32>
    %44 = tpu.matmul %38, %43, %cst_6 {dimension_numbers = #tpu.dot_dimension_numbers<[1], [0], [0], [1], [0, 0, 1, 1], [], []>} : vector<128x640xbf16>, vector<640x128xbf16>, vector<128x128xf32> -> vector<128x128xf32>
    %45 = arith.addf %41, %44 : vector<128x128xf32>
    %46 = vector.shape_cast %45 : vector<128x128xf32> to vector<8x16x128xf32>
    %cst_7 = arith.constant dense<0xFF800000> : vector<8x128xf32>
    %47 = vector.multi_reduction <maximumf>, %46, %cst_7 [1] : vector<8x16x128xf32> to vector<8x128xf32>
    %c0_8 = arith.constant 0 : index
    %c0_9 = arith.constant 0 : index
    %48 = vector.load %arg3[%c0_8, %c0_9] : memref<1x128xf32, #tpu.memory_space<vmem>>, vector<1x128xf32>
    %49 = vector.broadcast %48 : vector<1x128xf32> to vector<8x128xf32>
    %50 = arith.addf %47, %49 : vector<8x128xf32>
    %cst_10 = arith.constant 0.000000e+00 : f32
    %51 = vector.broadcast %cst_10 : f32 to vector<8x128xf32>
    %52 = arith.maximumf %50, %51 : vector<8x128xf32>
    %c0_11 = arith.constant 0 : index
    %c0_12 = arith.constant 0 : index
    %53 = vector.load %arg4[%c0_11, %c0_12] : memref<8x128xf32, #tpu.memory_space<vmem>>, vector<8x128xf32>
    tpu.vector_store %arg4[%c0_11, %c0_12], %52 {strides = array<i32>} : memref<8x128xf32, #tpu.memory_space<vmem>>, vector<8x128xf32>,
    return
  }
  func.func @transform_0(%arg0: i32) -> (i32, i32) {
    %c0_i32 = arith.constant 0 : i32
    %c0_i32_0 = arith.constant 0 : i32
    return %arg0, %c0_i32 : i32, i32
  }
  func.func @transform_1(%arg0: i32) -> (i32, i32, i32) {
    %c0_i32 = arith.constant 0 : i32
    %c0_i32_0 = arith.constant 0 : i32
    %c0_i32_1 = arith.constant 0 : i32
    %c0_i32_2 = arith.constant 0 : i32
    return %c0_i32, %c0_i32_0, %c0_i32_1 : i32, i32, i32
  }
  func.func @transform_2(%arg0: i32) -> (i32, i32) {
    %c0_i32 = arith.constant 0 : i32
    %c0_i32_0 = arith.constant 0 : i32
    %c0_i32_1 = arith.constant 0 : i32
    return %c0_i32, %c0_i32_0 : i32, i32
  }
  func.func @transform_3(%arg0: i32) -> (i32, i32) {
    %c0_i32 = arith.constant 0 : i32
    %c0_i32_0 = arith.constant 0 : i32
    return %arg0, %c0_i32 : i32, i32
  }
}

</mosaic_0001>

<llo_original>
// kernel: tpu_custom_call.1
$region0: #{tpu_custom_call.1}
  #allocation0 [shape = 'u32[]', space=smem, size = 0x4, offset = 0x4, fixed_abs, tag = 'smem constant byte address 0x4 - core index']
  #allocation1 [shape = 'u32[144,128]{1,0:T(1,128)}', space=vmem, size = 0x12000, scoped, tag = 'internal scratch']
  %s0 = inlined_call_operand.vmem [shape: s8[128,5], index: 0, kind: input, shape index: {}]
  %s1 = inlined_call_operand.hbm [shape: bf16[2,640,128], index: 1, kind: input, shape index: {}]
  %s2 = inlined_call_operand.vmem [shape: f32[1,128], index: 2, kind: input, shape index: {}]
  %s3 = inlined_call_operand.hbm [shape: f32[8,128], index: 3, kind: output, shape index: {}]
  %s4 = sld [smem:[#allocation0]]
  $region26: #{tpu_custom_call.1} parent=0
    _
  %s6 = ssub.s32 1, %s4
  %s7 = scalar_select 0, %s6, %s4
  $region1: #{tpu_custom_call.1} parent=0
    #allocation2 [shape = 'u8[327680]{0}', space=vmem, size = 0x50000, scoped, tag = 'input window, operand 1, single buffered']
    #allocation3 [shape = 's32[1]{0}', space=sflag, size = 0x4, scoped, tag = 'scoped memory for tpu_custom_call.1']
    #allocation4 [shape = 's32[1]{0}', space=sflag, size = 0x4, scoped, tag = 'scoped memory for tpu_custom_call.1']
    #allocation5 [shape = 'u8[4096]{0}', space=vmem, size = 0x1000, scoped, tag = 'output window, operand 0, single buffered']
    %8 = vsyncpa [#allocation3], 0
    %9 = vsyncpa [#allocation4], 0
    // Predicated region
    $region2: #{tpu_custom_call.1} parent=1 // pred_check
      _
    $region3: #{tpu_custom_call.1} parent=1 // pred_check_branch
      %11 = sbr.rel (0) target = $region5
    $region4: #{tpu_custom_call.1} parent=1 // pred_region
      _
    $region5: #{tpu_custom_call.1} parent=1 // pred_fallthru
      _
    // Predicated region
    $region6: #{tpu_custom_call.1} parent=1 // pred_check
      _
    $region7: #{tpu_custom_call.1} parent=1 // pred_check_branch
      %13 = sbr.rel (0) target = $region9
    $region8: #{tpu_custom_call.1} parent=1 // pred_region
      %s15 = ssub.s32 10240, 10240
      %16 = vsyncadd [#allocation3], %s15
      %s17 = sshll.u32 [#allocation2], 4
      %s18 = int_to_ptr.vmem [resolvable:$true] %s17
      %23 = dma.hbm_to_vmem [thread:$0]  %s1, 10240, %s18, [#allocation3], 64, 64, 4
    $region9: #{tpu_custom_call.1} parent=1 // pred_fallthru
      _
    // Predicated region
    $region10: #{tpu_custom_call.1} parent=1 // pred_check
      _
    $region11: #{tpu_custom_call.1} parent=1 // pred_check_branch
      %25 = sbr.rel (0) target = $region13
    $region12: #{tpu_custom_call.1} parent=1 // pred_region
      _
    $region13: #{tpu_custom_call.1} parent=1 // pred_fallthru
      _
    // Predicated region
    $region14: #{tpu_custom_call.1} parent=1 // pred_check
      _
    $region15: #{tpu_custom_call.1} parent=1 // pred_check_branch
      %27 = sbr.rel (0) target = $region17
    $region16: #{tpu_custom_call.1} parent=1 // pred_region
      %28 = dma.done [#allocation3], 10240
    $region17: #{tpu_custom_call.1} parent=1 // pred_fallthru
      _
    %v30 = vld [vmem:[%s0] sm:$0x3]
    %v31 = vld [vmem:[%s0 + $0x2] sm:$0x3]
    %v32 = vld [vmem:[%s0 + $0x4] sm:$0x3]
    %v33 = vld [vmem:[%s0 + $0x6] sm:$0x3]
    %v34 = vld [vmem:[%s0 + $0x8] sm:$0x3]
    %v35 = vld [vmem:[%s0 + $0xa] sm:$0x3]
    %v36 = vld [vmem:[%s0 + $0xc] sm:$0x3]
    %v37 = vld [vmem:[%s0 + $0xe] sm:$0x3]
    %v38 = vld [vmem:[%s0 + $0x10] sm:$0x3]
    %v39 = vld [vmem:[%s0 + $0x12] sm:$0x3]
    %v40 = vld [vmem:[%s0 + $0x14] sm:$0x3]
    %v41 = vld [vmem:[%s0 + $0x16] sm:$0x3]
    %v42 = vld [vmem:[%s0 + $0x18] sm:$0x3]
    %v43 = vld [vmem:[%s0 + $0x1a] sm:$0x3]
    %v44 = vld [vmem:[%s0 + $0x1c] sm:$0x3]
    %v45 = vld [vmem:[%s0 + $0x1e] sm:$0x3]
    %v46 = vunpack.c.0.s8 %v30
    %v47 = vunpack.c.0.s8 %v31
    %v48 = vunpack.c.0.s8 %v32
    %v49 = vunpack.c.0.s8 %v33
    %v50 = vunpack.c.0.s8 %v34
    %v51 = vunpack.c.0.s8 %v35
    %v52 = vunpack.c.0.s8 %v36
    %v53 = vunpack.c.0.s8 %v37
    %v54 = vunpack.c.0.s8 %v38
    %v55 = vunpack.c.0.s8 %v39
    %v56 = vunpack.c.0.s8 %v40
    %v57 = vunpack.c.0.s8 %v41
    %v58 = vunpack.c.0.s8 %v42
    %v59 = vunpack.c.0.s8 %v43
    %v60 = vunpack.c.0.s8 %v44
    %v61 = vunpack.c.0.s8 %v45
    %v62 = vlaneseq
    %v63 = vand.u32 %v62, 127
    %64 = vset.pattern.permute.xlu0 0
    %65 = vperm.xlu0 %64, %v46
    %v66 = vpop.permute.xlu0 %65
    %67 = vset.pattern.permute.xlu0 0
    %68 = vperm.xlu0 %67, %v47
    %v69 = vpop.permute.xlu0 %68
    %70 = vset.pattern.permute.xlu0 0
    %71 = vperm.xlu0 %70, %v48
    %v72 = vpop.permute.xlu0 %71
    %73 = vset.pattern.permute.xlu0 0
    %74 = vperm.xlu0 %73, %v49
    %v75 = vpop.permute.xlu0 %74
    %76 = vset.pattern.permute.xlu0 0
    %77 = vperm.xlu0 %76, %v50
    %v78 = vpop.permute.xlu0 %77
    %79 = vset.pattern.permute.xlu0 0
    %80 = vperm.xlu0 %79, %v51
    %v81 = vpop.permute.xlu0 %80
    %82 = vset.pattern.permute.xlu0 0
    %83 = vperm.xlu0 %82, %v52
    %v84 = vpop.permute.xlu0 %83
    %85 = vset.pattern.permute.xlu0 0
    %86 = vperm.xlu0 %85, %v53
    %v87 = vpop.permute.xlu0 %86
    %88 = vset.pattern.permute.xlu0 0
    %89 = vperm.xlu0 %88, %v54
    %v90 = vpop.permute.xlu0 %89
    %91 = vset.pattern.permute.xlu0 0
    %92 = vperm.xlu0 %91, %v55
    %v93 = vpop.permute.xlu0 %92
    %94 = vset.pattern.permute.xlu0 0
    %95 = vperm.xlu0 %94, %v56
    %v96 = vpop.permute.xlu0 %95
    %97 = vset.pattern.permute.xlu0 0
    %98 = vperm.xlu0 %97, %v57
    %v99 = vpop.permute.xlu0 %98
    %100 = vset.pattern.permute.xlu0 0
    %101 = vperm.xlu0 %100, %v58
    %v102 = vpop.permute.xlu0 %101
    %103 = vset.pattern.permute.xlu0 0
    %104 = vperm.xlu0 %103, %v59
    %v105 = vpop.permute.xlu0 %104
    %106 = vset.pattern.permute.xlu0 0
    %107 = vperm.xlu0 %106, %v60
    %v108 = vpop.permute.xlu0 %107
    %109 = vset.pattern.permute.xlu0 0
    %110 = vperm.xlu0 %109, %v61
    %v111 = vpop.permute.xlu0 %110
    %vm112 = vcmp.eq.s32.totalorder %v66, %v63
    %vm113 = vcmp.eq.s32.totalorder %v69, %v63
    %vm114 = vcmp.eq.s32.totalorder %v72, %v63
    %vm115 = vcmp.eq.s32.totalorder %v75, %v63
    %vm116 = vcmp.eq.s32.totalorder %v78, %v63
    %vm117 = vcmp.eq.s32.totalorder %v81, %v63
    %vm118 = vcmp.eq.s32.totalorder %v84, %v63
    %vm119 = vcmp.eq.s32.totalorder %v87, %v63
    %vm120 = vcmp.eq.s32.totalorder %v90, %v63
    %vm121 = vcmp.eq.s32.totalorder %v93, %v63
    %vm122 = vcmp.eq.s32.totalorder %v96, %v63
    %vm123 = vcmp.eq.s32.totalorder %v99, %v63
    %vm124 = vcmp.eq.s32.totalorder %v102, %v63
    %vm125 = vcmp.eq.s32.totalorder %v105, %v63
    %vm126 = vcmp.eq.s32.totalorder %v108, %v63
    %vm127 = vcmp.eq.s32.totalorder %v111, %v63
    %v128 = vsel %vm112, 1, 0
    %v129 = vsel %vm113, 1, 0
    %v130 = vsel %vm114, 1, 0
    %v131 = vsel %vm115, 1, 0
    %v132 = vsel %vm116, 1, 0
    %v133 = vsel %vm117, 1, 0
    %v134 = vsel %vm118, 1, 0
    %v135 = vsel %vm119, 1, 0
    %v136 = vsel %vm120, 1, 0
    %v137 = vsel %vm121, 1, 0
    %v138 = vsel %vm122, 1, 0
    %v139 = vsel %vm123, 1, 0
    %v140 = vsel %vm124, 1, 0
    %v141 = vsel %vm125, 1, 0
    %v142 = vsel %vm126, 1, 0
    %v143 = vsel %vm127, 1, 0
    %v144 = vcvt.s32.f32 %v128
    %v145 = vcvt.s32.f32 %v129
    %v146 = vcvt.s32.f32 %v130
    %v147 = vcvt.s32.f32 %v131
    %v148 = vcvt.s32.f32 %v132
    %v149 = vcvt.s32.f32 %v133
    %v150 = vcvt.s32.f32 %v134
    %v151 = vcvt.s32.f32 %v135
    %v152 = vcvt.s32.f32 %v136
    %v153 = vcvt.s32.f32 %v137
    %v154 = vcvt.s32.f32 %v138
    %v155 = vcvt.s32.f32 %v139
    %v156 = vcvt.s32.f32 %v140
    %v157 = vcvt.s32.f32 %v141
    %v158 = vcvt.s32.f32 %v142
    %v159 = vcvt.s32.f32 %v143
    %v160 = vpack.c.bf16 %v145, %v144
    %v161 = vpack.c.bf16 %v147, %v146
    %v162 = vpack.c.bf16 %v149, %v148
    %v163 = vpack.c.bf16 %v151, %v150
    %v164 = vpack.c.bf16 %v153, %v152
    %v165 = vpack.c.bf16 %v155, %v154
    %v166 = vpack.c.bf16 %v157, %v156
    %v167 = vpack.c.bf16 %v159, %v158
    %168 = vset.pattern.permute.xlu0 1
    %169 = vperm.xlu0 %168, %v46
    %v170 = vpop.permute.xlu0 %169
    %171 = vset.pattern.permute.xlu0 1
    %172 = vperm.xlu0 %171, %v47
    %v173 = vpop.permute.xlu0 %172
    %174 = vset.pattern.permute.xlu0 1
    %175 = vperm.xlu0 %174, %v48
    %v176 = vpop.permute.xlu0 %175
    %177 = vset.pattern.permute.xlu0 1
    %178 = vperm.xlu0 %177, %v49
    %v179 = vpop.permute.xlu0 %178
    %180 = vset.pattern.permute.xlu0 1
    %181 = vperm.xlu0 %180, %v50
    %v182 = vpop.permute.xlu0 %181
    %183 = vset.pattern.permute.xlu0 1
    %184 = vperm.xlu0 %183, %v51
    %v185 = vpop.permute.xlu0 %184
    %186 = vset.pattern.permute.xlu0 1
    %187 = vperm.xlu0 %186, %v52
    %v188 = vpop.permute.xlu0 %187
    %189 = vset.pattern.permute.xlu0 1
    %190 = vperm.xlu0 %189, %v53
    %v191 = vpop.permute.xlu0 %190
    %192 = vset.pattern.permute.xlu0 1
    %193 = vperm.xlu0 %192, %v54
    %v194 = vpop.permute.xlu0 %193
    %195 = vset.pattern.permute.xlu0 1
    %196 = vperm.xlu0 %195, %v55
    %v197 = vpop.permute.xlu0 %196
    %198 = vset.pattern.permute.xlu0 1
    %199 = vperm.xlu0 %198, %v56
    %v200 = vpop.permute.xlu0 %199
    %201 = vset.pattern.permute.xlu0 1
    %202 = vperm.xlu0 %201, %v57
    %v203 = vpop.permute.xlu0 %202
    %204 = vset.pattern.permute.xlu0 1
    %205 = vperm.xlu0 %204, %v58
    %v206 = vpop.permute.xlu0 %205
    %207 = vset.pattern.permute.xlu0 1
    %208 = vperm.xlu0 %207, %v59
    %v209 = vpop.permute.xlu0 %208
    %210 = vset.pattern.permute.xlu0 1
    %211 = vperm.xlu0 %210, %v60
    %v212 = vpop.permute.xlu0 %211
    %213 = vset.pattern.permute.xlu0 1
    %214 = vperm.xlu0 %213, %v61
    %v215 = vpop.permute.xlu0 %214
    %vm216 = vcmp.eq.s32.totalorder %v170, %v63
    %vm217 = vcmp.eq.s32.totalorder %v173, %v63
    %vm218 = vcmp.eq.s32.totalorder %v176, %v63
    %vm219 = vcmp.eq.s32.totalorder %v179, %v63
    %vm220 = vcmp.eq.s32.totalorder %v182, %v63
    %vm221 = vcmp.eq.s32.totalorder %v185, %v63
    %vm222 = vcmp.eq.s32.totalorder %v188, %v63
    %vm223 = vcmp.eq.s32.totalorder %v191, %v63
    %vm224 = vcmp.eq.s32.totalorder %v194, %v63
    %vm225 = vcmp.eq.s32.totalorder %v197, %v63
    %vm226 = vcmp.eq.s32.totalorder %v200, %v63
    %vm227 = vcmp.eq.s32.totalorder %v203, %v63
    %vm228 = vcmp.eq.s32.totalorder %v206, %v63
    %vm229 = vcmp.eq.s32.totalorder %v209, %v63
    %vm230 = vcmp.eq.s32.totalorder %v212, %v63
    %vm231 = vcmp.eq.s32.totalorder %v215, %v63
    %v232 = vsel %vm216, 1, 0
    %v233 = vsel %vm217, 1, 0
    %v234 = vsel %vm218, 1, 0
    %v235 = vsel %vm219, 1, 0
    %v236 = vsel %vm220, 1, 0
    %v237 = vsel %vm221, 1, 0
    %v238 = vsel %vm222, 1, 0
    %v239 = vsel %vm223, 1, 0
    %v240 = vsel %vm224, 1, 0
    %v241 = vsel %vm225, 1, 0
    %v242 = vsel %vm226, 1, 0
    %v243 = vsel %vm227, 1, 0
    %v244 = vsel %vm228, 1, 0
    %v245 = vsel %vm229, 1, 0
    %v246 = vsel %vm230, 1, 0
    %v247 = vsel %vm231, 1, 0
    %v248 = vcvt.s32.f32 %v232
    %v249 = vcvt.s32.f32 %v233
    %v250 = vcvt.s32.f32 %v234
    %v251 = vcvt.s32.f32 %v235
    %v252 = vcvt.s32.f32 %v236
    %v253 = vcvt.s32.f32 %v237
    %v254 = vcvt.s32.f32 %v238
    %v255 = vcvt.s32.f32 %v239
    %v256 = vcvt.s32.f32 %v240
    %v257 = vcvt.s32.f32 %v241
    %v258 = vcvt.s32.f32 %v242
    %v259 = vcvt.s32.f32 %v243
    %v260 = vcvt.s32.f32 %v244
    %v261 = vcvt.s32.f32 %v245
    %v262 = vcvt.s32.f32 %v246
    %v263 = vcvt.s32.f32 %v247
    %v264 = vpack.c.bf16 %v249, %v248
    %v265 = vpack.c.bf16 %v251, %v250
    %v266 = vpack.c.bf16 %v253, %v252
    %v267 = vpack.c.bf16 %v255, %v254
    %v268 = vpack.c.bf16 %v257, %v256
    %v269 = vpack.c.bf16 %v259, %v258
    %v270 = vpack.c.bf16 %v261, %v260
    %v271 = vpack.c.bf16 %v263, %v262
    %272 = vset.pattern.permute.xlu0 2
    %273 = vperm.xlu0 %272, %v46
    %v274 = vpop.permute.xlu0 %273
    %275 = vset.pattern.permute.xlu0 2
    %276 = vperm.xlu0 %275, %v47
    %v277 = vpop.permute.xlu0 %276
    %278 = vset.pattern.permute.xlu0 2
    %279 = vperm.xlu0 %278, %v48
    %v280 = vpop.permute.xlu0 %279
    %281 = vset.pattern.permute.xlu0 2
    %282 = vperm.xlu0 %281, %v49
    %v283 = vpop.permute.xlu0 %282
    %284 = vset.pattern.permute.xlu0 2
    %285 = vperm.xlu0 %284, %v50
    %v286 = vpop.permute.xlu0 %285
    %287 = vset.pattern.permute.xlu0 2
    %288 = vperm.xlu0 %287, %v51
    %v289 = vpop.permute.xlu0 %288
    %290 = vset.pattern.permute.xlu0 2
    %291 = vperm.xlu0 %290, %v52
    %v292 = vpop.permute.xlu0 %291
    %293 = vset.pattern.permute.xlu0 2
    %294 = vperm.xlu0 %293, %v53
    %v295 = vpop.permute.xlu0 %294
    %296 = vset.pattern.permute.xlu0 2
    %297 = vperm.xlu0 %296, %v54
    %v298 = vpop.permute.xlu0 %297
    %299 = vset.pattern.permute.xlu0 2
    %300 = vperm.xlu0 %299, %v55
    %v301 = vpop.permute.xlu0 %300
    %302 = vset.pattern.permute.xlu0 2
    %303 = vperm.xlu0 %302, %v56
    %v304 = vpop.permute.xlu0 %303
    %305 = vset.pattern.permute.xlu0 2
    %306 = vperm.xlu0 %305, %v57
    %v307 = vpop.permute.xlu0 %306
    %308 = vset.pattern.permute.xlu0 2
    %309 = vperm.xlu0 %308, %v58
    %v310 = vpop.permute.xlu0 %309
    %311 = vset.pattern.permute.xlu0 2
    %312 = vperm.xlu0 %311, %v59
    %v313 = vpop.permute.xlu0 %312
    %314 = vset.pattern.permute.xlu0 2
    %315 = vperm.xlu0 %314, %v60
    %v316 = vpop.permute.xlu0 %315
    %317 = vset.pattern.permute.xlu0 2
    %318 = vperm.xlu0 %317, %v61
    %v319 = vpop.permute.xlu0 %318
    %vm320 = vcmp.eq.s32.totalorder %v274, %v63
    %vm321 = vcmp.eq.s32.totalorder %v277, %v63
    %vm322 = vcmp.eq.s32.totalorder %v280, %v63
    %vm323 = vcmp.eq.s32.totalorder %v283, %v63
    %vm324 = vcmp.eq.s32.totalorder %v286, %v63
    %vm325 = vcmp.eq.s32.totalorder %v289, %v63
    %vm326 = vcmp.eq.s32.totalorder %v292, %v63
    %vm327 = vcmp.eq.s32.totalorder %v295, %v63
    %vm328 = vcmp.eq.s32.totalorder %v298, %v63
    %vm329 = vcmp.eq.s32.totalorder %v301, %v63
    %vm330 = vcmp.eq.s32.totalorder %v304, %v63
    %vm331 = vcmp.eq.s32.totalorder %v307, %v63
    %vm332 = vcmp.eq.s32.totalorder %v310, %v63
    %vm333 = vcmp.eq.s32.totalorder %v313, %v63
    %vm334 = vcmp.eq.s32.totalorder %v316, %v63
    %vm335 = vcmp.eq.s32.totalorder %v319, %v63
    %v336 = vsel %vm320, 1, 0
    %v337 = vsel %vm321, 1, 0
    %v338 = vsel %vm322, 1, 0
    %v339 = vsel %vm323, 1, 0
    %v340 = vsel %vm324, 1, 0
    %v341 = vsel %vm325, 1, 0
    %v342 = vsel %vm326, 1, 0
    %v343 = vsel %vm327, 1, 0
    %v344 = vsel %vm328, 1, 0
    %v345 = vsel %vm329, 1, 0
    %v346 = vsel %vm330, 1, 0
    %v347 = vsel %vm331, 1, 0
    %v348 = vsel %vm332, 1, 0
    %v349 = vsel %vm333, 1, 0
    %v350 = vsel %vm334, 1, 0
    %v351 = vsel %vm335, 1, 0
    %v352 = vcvt.s32.f32 %v336
    %v353 = vcvt.s32.f32 %v337
    %v354 = vcvt.s32.f32 %v338
    %v355 = vcvt.s32.f32 %v339
    %v356 = vcvt.s32.f32 %v340
    %v357 = vcvt.s32.f32 %v341
    %v358 = vcvt.s32.f32 %v342
    %v359 = vcvt.s32.f32 %v343
    %v360 = vcvt.s32.f32 %v344
    %v361 = vcvt.s32.f32 %v345
    %v362 = vcvt.s32.f32 %v346
    %v363 = vcvt.s32.f32 %v347
    %v364 = vcvt.s32.f32 %v348
    %v365 = vcvt.s32.f32 %v349
    %v366 = vcvt.s32.f32 %v350
    %v367 = vcvt.s32.f32 %v351
    %v368 = vpack.c.bf16 %v353, %v352
    %v369 = vpack.c.bf16 %v355, %v354
    %v370 = vpack.c.bf16 %v357, %v356
    %v371 = vpack.c.bf16 %v359, %v358
    %v372 = vpack.c.bf16 %v361, %v360
    %v373 = vpack.c.bf16 %v363, %v362
    %v374 = vpack.c.bf16 %v365, %v364
    %v375 = vpack.c.bf16 %v367, %v366
    %376 = vset.pattern.permute.xlu0 3
    %377 = vperm.xlu0 %376, %v46
    %v378 = vpop.permute.xlu0 %377
    %379 = vset.pattern.permute.xlu0 3
    %380 = vperm.xlu0 %379, %v47
    %v381 = vpop.permute.xlu0 %380
    %382 = vset.pattern.permute.xlu0 3
    %383 = vperm.xlu0 %382, %v48
    %v384 = vpop.permute.xlu0 %383
    %385 = vset.pattern.permute.xlu0 3
    %386 = vperm.xlu0 %385, %v49
    %v387 = vpop.permute.xlu0 %386
    %388 = vset.pattern.permute.xlu0 3
    %389 = vperm.xlu0 %388, %v50
    %v390 = vpop.permute.xlu0 %389
    %391 = vset.pattern.permute.xlu0 3
    %392 = vperm.xlu0 %391, %v51
    %v393 = vpop.permute.xlu0 %392
    %394 = vset.pattern.permute.xlu0 3
    %395 = vperm.xlu0 %394, %v52
    %v396 = vpop.permute.xlu0 %395
    %397 = vset.pattern.permute.xlu0 3
    %398 = vperm.xlu0 %397, %v53
    %v399 = vpop.permute.xlu0 %398
    %400 = vset.pattern.permute.xlu0 3
    %401 = vperm.xlu0 %400, %v54
    %v402 = vpop.permute.xlu0 %401
    %403 = vset.pattern.permute.xlu0 3
    %404 = vperm.xlu0 %403, %v55
    %v405 = vpop.permute.xlu0 %404
    %406 = vset.pattern.permute.xlu0 3
    %407 = vperm.xlu0 %406, %v56
    %v408 = vpop.permute.xlu0 %407
    %409 = vset.pattern.permute.xlu0 3
    %410 = vperm.xlu0 %409, %v57
    %v411 = vpop.permute.xlu0 %410
    %412 = vset.pattern.permute.xlu0 3
    %413 = vperm.xlu0 %412, %v58
    %v414 = vpop.permute.xlu0 %413
    %415 = vset.pattern.permute.xlu0 3
    %416 = vperm.xlu0 %415, %v59
    %v417 = vpop.permute.xlu0 %416
    %418 = vset.pattern.permute.xlu0 3
    %419 = vperm.xlu0 %418, %v60
    %v420 = vpop.permute.xlu0 %419
    %421 = vset.pattern.permute.xlu0 3
    %422 = vperm.xlu0 %421, %v61
    %v423 = vpop.permute.xlu0 %422
    %vm424 = vcmp.eq.s32.totalorder %v378, %v63
    %vm425 = vcmp.eq.s32.totalorder %v381, %v63
    %vm426 = vcmp.eq.s32.totalorder %v384, %v63
    %vm427 = vcmp.eq.s32.totalorder %v387, %v63
    %vm428 = vcmp.eq.s32.totalorder %v390, %v63
    %vm429 = vcmp.eq.s32.totalorder %v393, %v63
    %vm430 = vcmp.eq.s32.totalorder %v396, %v63
    %vm431 = vcmp.eq.s32.totalorder %v399, %v63
    %vm432 = vcmp.eq.s32.totalorder %v402, %v63
    %vm433 = vcmp.eq.s32.totalorder %v405, %v63
    %vm434 = vcmp.eq.s32.totalorder %v408, %v63
    %vm435 = vcmp.eq.s32.totalorder %v411, %v63
    %vm436 = vcmp.eq.s32.totalorder %v414, %v63
    %vm437 = vcmp.eq.s32.totalorder %v417, %v63
    %vm438 = vcmp.eq.s32.totalorder %v420, %v63
    %vm439 = vcmp.eq.s32.totalorder %v423, %v63
    %v440 = vsel %vm424, 1, 0
    %v441 = vsel %vm425, 1, 0
    %v442 = vsel %vm426, 1, 0
    %v443 = vsel %vm427, 1, 0
    %v444 = vsel %vm428, 1, 0
    %v445 = vsel %vm429, 1, 0
    %v446 = vsel %vm430, 1, 0
    %v447 = vsel %vm431, 1, 0
    %v448 = vsel %vm432, 1, 0
    %v449 = vsel %vm433, 1, 0
    %v450 = vsel %vm434, 1, 0
    %v451 = vsel %vm435, 1, 0
    %v452 = vsel %vm436, 1, 0
    %v453 = vsel %vm437, 1, 0
    %v454 = vsel %vm438, 1, 0
    %v455 = vsel %vm439, 1, 0
    %v456 = vcvt.s32.f32 %v440
    %v457 = vcvt.s32.f32 %v441
    %v458 = vcvt.s32.f32 %v442
    %v459 = vcvt.s32.f32 %v443
    %v460 = vcvt.s32.f32 %v444
    %v461 = vcvt.s32.f32 %v445
    %v462 = vcvt.s32.f32 %v446
    %v463 = vcvt.s32.f32 %v447
    %v464 = vcvt.s32.f32 %v448
    %v465 = vcvt.s32.f32 %v449
    %v466 = vcvt.s32.f32 %v450
    %v467 = vcvt.s32.f32 %v451
    %v468 = vcvt.s32.f32 %v452
    %v469 = vcvt.s32.f32 %v453
    %v470 = vcvt.s32.f32 %v454
    %v471 = vcvt.s32.f32 %v455
    %v472 = vpack.c.bf16 %v457, %v456
    %v473 = vpack.c.bf16 %v459, %v458
    %v474 = vpack.c.bf16 %v461, %v460
    %v475 = vpack.c.bf16 %v463, %v462
    %v476 = vpack.c.bf16 %v465, %v464
    %v477 = vpack.c.bf16 %v467, %v466
    %v478 = vpack.c.bf16 %v469, %v468
    %v479 = vpack.c.bf16 %v471, %v470
    %480 = vset.pattern.permute.xlu0 4
    %481 = vperm.xlu0 %480, %v46
    %v482 = vpop.permute.xlu0 %481
    %483 = vset.pattern.permute.xlu0 4
    %484 = vperm.xlu0 %483, %v47
    %v485 = vpop.permute.xlu0 %484
    %486 = vset.pattern.permute.xlu0 4
    %487 = vperm.xlu0 %486, %v48
    %v488 = vpop.permute.xlu0 %487
    %489 = vset.pattern.permute.xlu0 4
    %490 = vperm.xlu0 %489, %v49
    %v491 = vpop.permute.xlu0 %490
    %492 = vset.pattern.permute.xlu0 4
    %493 = vperm.xlu0 %492, %v50
    %v494 = vpop.permute.xlu0 %493
    %495 = vset.pattern.permute.xlu0 4
    %496 = vperm.xlu0 %495, %v51
    %v497 = vpop.permute.xlu0 %496
    %498 = vset.pattern.permute.xlu0 4
    %499 = vperm.xlu0 %498, %v52
    %v500 = vpop.permute.xlu0 %499
    %501 = vset.pattern.permute.xlu0 4
    %502 = vperm.xlu0 %501, %v53
    %v503 = vpop.permute.xlu0 %502
    %504 = vset.pattern.permute.xlu0 4
    %505 = vperm.xlu0 %504, %v54
    %v506 = vpop.permute.xlu0 %505
    %507 = vset.pattern.permute.xlu0 4
    %508 = vperm.xlu0 %507, %v55
    %v509 = vpop.permute.xlu0 %508
    %510 = vset.pattern.permute.xlu0 4
    %511 = vperm.xlu0 %510, %v56
    %v512 = vpop.permute.xlu0 %511
    %513 = vset.pattern.permute.xlu0 4
    %514 = vperm.xlu0 %513, %v57
    %v515 = vpop.permute.xlu0 %514
    %516 = vset.pattern.permute.xlu0 4
    %517 = vperm.xlu0 %516, %v58
    %v518 = vpop.permute.xlu0 %517
    %519 = vset.pattern.permute.xlu0 4
    %520 = vperm.xlu0 %519, %v59
    %v521 = vpop.permute.xlu0 %520
    %522 = vset.pattern.permute.xlu0 4
    %523 = vperm.xlu0 %522, %v60
    %v524 = vpop.permute.xlu0 %523
    %525 = vset.pattern.permute.xlu0 4
    %526 = vperm.xlu0 %525, %v61
    %v527 = vpop.permute.xlu0 %526
    %vm528 = vcmp.eq.s32.totalorder %v482, %v63
    %vm529 = vcmp.eq.s32.totalorder %v485, %v63
    %vm530 = vcmp.eq.s32.totalorder %v488, %v63
    %vm531 = vcmp.eq.s32.totalorder %v491, %v63
    %vm532 = vcmp.eq.s32.totalorder %v494, %v63
    %vm533 = vcmp.eq.s32.totalorder %v497, %v63
    %vm534 = vcmp.eq.s32.totalorder %v500, %v63
    %vm535 = vcmp.eq.s32.totalorder %v503, %v63
    %vm536 = vcmp.eq.s32.totalorder %v506, %v63
    %vm537 = vcmp.eq.s32.totalorder %v509, %v63
    %vm538 = vcmp.eq.s32.totalorder %v512, %v63
    %vm539 = vcmp.eq.s32.totalorder %v515, %v63
    %vm540 = vcmp.eq.s32.totalorder %v518, %v63
    %vm541 = vcmp.eq.s32.totalorder %v521, %v63
    %vm542 = vcmp.eq.s32.totalorder %v524, %v63
    %vm543 = vcmp.eq.s32.totalorder %v527, %v63
    %v544 = vsel %vm528, 1, 0
    %v545 = vsel %vm529, 1, 0
    %v546 = vsel %vm530, 1, 0
    %v547 = vsel %vm531, 1, 0
    %v548 = vsel %vm532, 1, 0
    %v549 = vsel %vm533, 1, 0
    %v550 = vsel %vm534, 1, 0
    %v551 = vsel %vm535, 1, 0
    %v552 = vsel %vm536, 1, 0
    %v553 = vsel %vm537, 1, 0
    %v554 = vsel %vm538, 1, 0
    %v555 = vsel %vm539, 1, 0
    %v556 = vsel %vm540, 1, 0
    %v557 = vsel %vm541, 1, 0
    %v558 = vsel %vm542, 1, 0
    %v559 = vsel %vm543, 1, 0
    %v560 = vcvt.s32.f32 %v544
    %v561 = vcvt.s32.f32 %v545
    %v562 = vcvt.s32.f32 %v546
    %v563 = vcvt.s32.f32 %v547
    %v564 = vcvt.s32.f32 %v548
    %v565 = vcvt.s32.f32 %v549
    %v566 = vcvt.s32.f32 %v550
    %v567 = vcvt.s32.f32 %v551
    %v568 = vcvt.s32.f32 %v552
    %v569 = vcvt.s32.f32 %v553
    %v570 = vcvt.s32.f32 %v554
    %v571 = vcvt.s32.f32 %v555
    %v572 = vcvt.s32.f32 %v556
    %v573 = vcvt.s32.f32 %v557
    %v574 = vcvt.s32.f32 %v558
    %v575 = vcvt.s32.f32 %v559
    %v576 = vpack.c.bf16 %v561, %v560
    %v577 = vpack.c.bf16 %v563, %v562
    %v578 = vpack.c.bf16 %v565, %v564
    %v579 = vpack.c.bf16 %v567, %v566
    %v580 = vpack.c.bf16 %v569, %v568
    %v581 = vpack.c.bf16 %v571, %v570
    %v582 = vpack.c.bf16 %v573, %v572
    %v583 = vpack.c.bf16 %v575, %v574
    %v584 = vld [vmem:[#allocation2] sm:$0xf]
    %v585 = vld [vmem:[#allocation2 + $0x4] sm:$0xf]
    %v586 = vld [vmem:[#allocation2 + $0x8] sm:$0xf]
    %v587 = vld [vmem:[#allocation2 + $0xc] sm:$0xf]
    %v588 = vld [vmem:[#allocation2 + $0x10] sm:$0xf]
    %v589 = vld [vmem:[#allocation2 + $0x14] sm:$0xf]
    %v590 = vld [vmem:[#allocation2 + $0x18] sm:$0xf]
    %v591 = vld [vmem:[#allocation2 + $0x1c] sm:$0xf]
    %v592 = vld [vmem:[#allocation2 + $0x20] sm:$0xf]
    %v593 = vld [vmem:[#allocation2 + $0x24] sm:$0xf]
    %v594 = vld [vmem:[#allocation2 + $0x28] sm:$0xf]
    %v595 = vld [vmem:[#allocation2 + $0x2c] sm:$0xf]
    %v596 = vld [vmem:[#allocation2 + $0x30] sm:$0xf]
    %v597 = vld [vmem:[#allocation2 + $0x34] sm:$0xf]
    %v598 = vld [vmem:[#allocation2 + $0x38] sm:$0xf]
    %v599 = vld [vmem:[#allocation2 + $0x3c] sm:$0xf]
    %v600 = vld [vmem:[#allocation2 + $0x40] sm:$0xf]
    %v601 = vld [vmem:[#allocation2 + $0x44] sm:$0xf]
    %v602 = vld [vmem:[#allocation2 + $0x48] sm:$0xf]
    %v603 = vld [vmem:[#allocation2 + $0x4c] sm:$0xf]
    %v604 = vld [vmem:[#allocation2 + $0x50] sm:$0xf]
    %v605 = vld [vmem:[#allocation2 + $0x54] sm:$0xf]
    %v606 = vld [vmem:[#allocation2 + $0x58] sm:$0xf]
    %v607 = vld [vmem:[#allocation2 + $0x5c] sm:$0xf]
    %v608 = vld [vmem:[#allocation2 + $0x60] sm:$0xf]
    %v609 = vld [vmem:[#allocation2 + $0x64] sm:$0xf]
    %v610 = vld [vmem:[#allocation2 + $0x68] sm:$0xf]
    %v611 = vld [vmem:[#allocation2 + $0x6c] sm:$0xf]
    %v612 = vld [vmem:[#allocation2 + $0x70] sm:$0xf]
    %v613 = vld [vmem:[#allocation2 + $0x74] sm:$0xf]
    %v614 = vld [vmem:[#allocation2 + $0x78] sm:$0xf]
    %v615 = vld [vmem:[#allocation2 + $0x7c] sm:$0xf]
    %v616 = vld [vmem:[#allocation2 + $0x80] sm:$0xf]
    %v617 = vld [vmem:[#allocation2 + $0x84] sm:$0xf]
    %v618 = vld [vmem:[#allocation2 + $0x88] sm:$0xf]
    %v619 = vld [vmem:[#allocation2 + $0x8c] sm:$0xf]
    %v620 = vld [vmem:[#allocation2 + $0x90] sm:$0xf]
    %v621 = vld [vmem:[#allocation2 + $0x94] sm:$0xf]
    %v622 = vld [vmem:[#allocation2 + $0x98] sm:$0xf]
    %v623 = vld [vmem:[#allocation2 + $0x9c] sm:$0xf]
    %v624 = vld [vmem:[#allocation2 + $0xa0] sm:$0xf]
    %v625 = vld [vmem:[#allocation2 + $0xa4] sm:$0xf]
    %v626 = vld [vmem:[#allocation2 + $0xa8] sm:$0xf]
    %v627 = vld [vmem:[#allocation2 + $0xac] sm:$0xf]
    %v628 = vld [vmem:[#allocation2 + $0xb0] sm:$0xf]
    %v629 = vld [vmem:[#allocation2 + $0xb4] sm:$0xf]
    %v630 = vld [vmem:[#allocation2 + $0xb8] sm:$0xf]
    %v631 = vld [vmem:[#allocation2 + $0xbc] sm:$0xf]
    %v632 = vld [vmem:[#allocation2 + $0xc0] sm:$0xf]
    %v633 = vld [vmem:[#allocation2 + $0xc4] sm:$0xf]
    %v634 = vld [vmem:[#allocation2 + $0xc8] sm:$0xf]
    %v635 = vld [vmem:[#allocation2 + $0xcc] sm:$0xf]
    %v636 = vld [vmem:[#allocation2 + $0xd0] sm:$0xf]
    %v637 = vld [vmem:[#allocation2 + $0xd4] sm:$0xf]
    %v638 = vld [vmem:[#allocation2 + $0xd8] sm:$0xf]
    %v639 = vld [vmem:[#allocation2 + $0xdc] sm:$0xf]
    %v640 = vld [vmem:[#allocation2 + $0xe0] sm:$0xf]
    %v641 = vld [vmem:[#allocation2 + $0xe4] sm:$0xf]
    %v642 = vld [vmem:[#allocation2 + $0xe8] sm:$0xf]
    %v643 = vld [vmem:[#allocation2 + $0xec] sm:$0xf]
    %v644 = vld [vmem:[#allocation2 + $0xf0] sm:$0xf]
    %v645 = vld [vmem:[#allocation2 + $0xf4] sm:$0xf]
    %v646 = vld [vmem:[#allocation2 + $0xf8] sm:$0xf]
    %v647 = vld [vmem:[#allocation2 + $0xfc] sm:$0xf]
    %v648 = vld [vmem:[#allocation2 + $0x100] sm:$0xf]
    %v649 = vld [vmem:[#allocation2 + $0x104] sm:$0xf]
    %v650 = vld [vmem:[#allocation2 + $0x108] sm:$0xf]
    %v651 = vld [vmem:[#allocation2 + $0x10c] sm:$0xf]
    %v652 = vld [vmem:[#allocation2 + $0x110] sm:$0xf]
    %v653 = vld [vmem:[#allocation2 + $0x114] sm:$0xf]
    %v654 = vld [vmem:[#allocation2 + $0x118] sm:$0xf]
    %v655 = vld [vmem:[#allocation2 + $0x11c] sm:$0xf]
    %v656 = vld [vmem:[#allocation2 + $0x120] sm:$0xf]
    %v657 = vld [vmem:[#allocation2 + $0x124] sm:$0xf]
    %v658 = vld [vmem:[#allocation2 + $0x128] sm:$0xf]
    %v659 = vld [vmem:[#allocation2 + $0x12c] sm:$0xf]
    %v660 = vld [vmem:[#allocation2 + $0x130] sm:$0xf]
    %v661 = vld [vmem:[#allocation2 + $0x134] sm:$0xf]
    %v662 = vld [vmem:[#allocation2 + $0x138] sm:$0xf]
    %v663 = vld [vmem:[#allocation2 + $0x13c] sm:$0xf]
    %s664 = scalar_lea.vmem [#allocation2], 320
    %v665 = vld [vmem:[%s664] sm:$0xf]
    %v666 = vld [vmem:[%s664 + $0x4] sm:$0xf]
    %v667 = vld [vmem:[%s664 + $0x8] sm:$0xf]
    %v668 = vld [vmem:[%s664 + $0xc] sm:$0xf]
    %v669 = vld [vmem:[%s664 + $0x10] sm:$0xf]
    %v670 = vld [vmem:[%s664 + $0x14] sm:$0xf]
    %v671 = vld [vmem:[%s664 + $0x18] sm:$0xf]
    %v672 = vld [vmem:[%s664 + $0x1c] sm:$0xf]
    %v673 = vld [vmem:[%s664 + $0x20] sm:$0xf]
    %v674 = vld [vmem:[%s664 + $0x24] sm:$0xf]
    %v675 = vld [vmem:[%s664 + $0x28] sm:$0xf]
    %v676 = vld [vmem:[%s664 + $0x2c] sm:$0xf]
    %v677 = vld [vmem:[%s664 + $0x30] sm:$0xf]
    %v678 = vld [vmem:[%s664 + $0x34] sm:$0xf]
    %v679 = vld [vmem:[%s664 + $0x38] sm:$0xf]
    %v680 = vld [vmem:[%s664 + $0x3c] sm:$0xf]
    %v681 = vld [vmem:[%s664 + $0x40] sm:$0xf]
    %v682 = vld [vmem:[%s664 + $0x44] sm:$0xf]
    %v683 = vld [vmem:[%s664 + $0x48] sm:$0xf]
    %v684 = vld [vmem:[%s664 + $0x4c] sm:$0xf]
    %v685 = vld [vmem:[%s664 + $0x50] sm:$0xf]
    %v686 = vld [vmem:[%s664 + $0x54] sm:$0xf]
    %v687 = vld [vmem:[%s664 + $0x58] sm:$0xf]
    %v688 = vld [vmem:[%s664 + $0x5c] sm:$0xf]
    %v689 = vld [vmem:[%s664 + $0x60] sm:$0xf]
    %v690 = vld [vmem:[%s664 + $0x64] sm:$0xf]
    %v691 = vld [vmem:[%s664 + $0x68] sm:$0xf]
    %v692 = vld [vmem:[%s664 + $0x6c] sm:$0xf]
    %v693 = vld [vmem:[%s664 + $0x70] sm:$0xf]
    %v694 = vld [vmem:[%s664 + $0x74] sm:$0xf]
    %v695 = vld [vmem:[%s664 + $0x78] sm:$0xf]
    %v696 = vld [vmem:[%s664 + $0x7c] sm:$0xf]
    %v697 = vld [vmem:[%s664 + $0x80] sm:$0xf]
    %v698 = vld [vmem:[%s664 + $0x84] sm:$0xf]
    %v699 = vld [vmem:[%s664 + $0x88] sm:$0xf]
    %v700 = vld [vmem:[%s664 + $0x8c] sm:$0xf]
    %v701 = vld [vmem:[%s664 + $0x90] sm:$0xf]
    %v702 = vld [vmem:[%s664 + $0x94] sm:$0xf]
    %v703 = vld [vmem:[%s664 + $0x98] sm:$0xf]
    %v704 = vld [vmem:[%s664 + $0x9c] sm:$0xf]
    %v705 = vld [vmem:[%s664 + $0xa0] sm:$0xf]
    %v706 = vld [vmem:[%s664 + $0xa4] sm:$0xf]
    %v707 = vld [vmem:[%s664 + $0xa8] sm:$0xf]
    %v708 = vld [vmem:[%s664 + $0xac] sm:$0xf]
    %v709 = vld [vmem:[%s664 + $0xb0] sm:$0xf]
    %v710 = vld [vmem:[%s664 + $0xb4] sm:$0xf]
    %v711 = vld [vmem:[%s664 + $0xb8] sm:$0xf]
    %v712 = vld [vmem:[%s664 + $0xbc] sm:$0xf]
    %v713 = vld [vmem:[%s664 + $0xc0] sm:$0xf]
    %v714 = vld [vmem:[%s664 + $0xc4] sm:$0xf]
    %v715 = vld [vmem:[%s664 + $0xc8] sm:$0xf]
    %v716 = vld [vmem:[%s664 + $0xcc] sm:$0xf]
    %v717 = vld [vmem:[%s664 + $0xd0] sm:$0xf]
    %v718 = vld [vmem:[%s664 + $0xd4] sm:$0xf]
    %v719 = vld [vmem:[%s664 + $0xd8] sm:$0xf]
    %v720 = vld [vmem:[%s664 + $0xdc] sm:$0xf]
    %v721 = vld [vmem:[%s664 + $0xe0] sm:$0xf]
    %v722 = vld [vmem:[%s664 + $0xe4] sm:$0xf]
    %v723 = vld [vmem:[%s664 + $0xe8] sm:$0xf]
    %v724 = vld [vmem:[%s664 + $0xec] sm:$0xf]
    %v725 = vld [vmem:[%s664 + $0xf0] sm:$0xf]
    %v726 = vld [vmem:[%s664 + $0xf4] sm:$0xf]
    %v727 = vld [vmem:[%s664 + $0xf8] sm:$0xf]
    %v728 = vld [vmem:[%s664 + $0xfc] sm:$0xf]
    %v729 = vld [vmem:[%s664 + $0x100] sm:$0xf]
    %v730 = vld [vmem:[%s664 + $0x104] sm:$0xf]
    %v731 = vld [vmem:[%s664 + $0x108] sm:$0xf]
    %v732 = vld [vmem:[%s664 + $0x10c] sm:$0xf]
    %v733 = vld [vmem:[%s664 + $0x110] sm:$0xf]
    %v734 = vld [vmem:[%s664 + $0x114] sm:$0xf]
    %v735 = vld [vmem:[%s664 + $0x118] sm:$0xf]
    %v736 = vld [vmem:[%s664 + $0x11c] sm:$0xf]
    %v737 = vld [vmem:[%s664 + $0x120] sm:$0xf]
    %v738 = vld [vmem:[%s664 + $0x124] sm:$0xf]
    %v739 = vld [vmem:[%s664 + $0x128] sm:$0xf]
    %v740 = vld [vmem:[%s664 + $0x12c] sm:$0xf]
    %v741 = vld [vmem:[%s664 + $0x130] sm:$0xf]
    %v742 = vld [vmem:[%s664 + $0x134] sm:$0xf]
    %v743 = vld [vmem:[%s664 + $0x138] sm:$0xf]
    %v744 = vld [vmem:[%s664 + $0x13c] sm:$0xf]
    %v825 = vunpack.c.l.b16 %v665
    %v826 = vunpack.c.l.b16 %v666
    %v827 = vunpack.c.l.b16 %v667
    %v828 = vunpack.c.l.b16 %v668
    %v829 = vunpack.c.l.b16 %v669
    %v830 = vunpack.c.l.b16 %v670
    %v831 = vunpack.c.l.b16 %v671
    %v832 = vunpack.c.l.b16 %v672
    %v833 = vunpack.c.l.b16 %v673
    %v834 = vunpack.c.l.b16 %v674
    %v835 = vunpack.c.l.b16 %v675
    %v836 = vunpack.c.l.b16 %v676
    %v837 = vunpack.c.l.b16 %v677
    %v838 = vunpack.c.l.b16 %v678
    %v839 = vunpack.c.l.b16 %v679
    %v840 = vunpack.c.l.b16 %v680
    %v841 = vunpack.c.l.b16 %v681
    %v842 = vunpack.c.l.b16 %v682
    %v843 = vunpack.c.l.b16 %v683
    %v844 = vunpack.c.l.b16 %v684
    %v845 = vunpack.c.l.b16 %v685
    %v846 = vunpack.c.l.b16 %v686
    %v847 = vunpack.c.l.b16 %v687
    %v848 = vunpack.c.l.b16 %v688
    %v849 = vunpack.c.l.b16 %v689
    %v850 = vunpack.c.l.b16 %v690
    %v851 = vunpack.c.l.b16 %v691
    %v852 = vunpack.c.l.b16 %v692
    %v853 = vunpack.c.l.b16 %v693
    %v854 = vunpack.c.l.b16 %v694
    %v855 = vunpack.c.l.b16 %v695
    %v856 = vunpack.c.l.b16 %v696
    %v857 = vunpack.c.l.b16 %v697
    %v858 = vunpack.c.l.b16 %v698
    %v859 = vunpack.c.l.b16 %v699
    %v860 = vunpack.c.l.b16 %v700
    %v861 = vunpack.c.l.b16 %v701
    %v862 = vunpack.c.l.b16 %v702
    %v863 = vunpack.c.l.b16 %v703
    %v864 = vunpack.c.l.b16 %v704
    %v865 = vunpack.c.l.b16 %v705
    %v866 = vunpack.c.l.b16 %v706
    %v867 = vunpack.c.l.b16 %v707
    %v868 = vunpack.c.l.b16 %v708
    %v869 = vunpack.c.l.b16 %v709
    %v870 = vunpack.c.l.b16 %v710
    %v871 = vunpack.c.l.b16 %v711
    %v872 = vunpack.c.l.b16 %v712
    %v873 = vunpack.c.l.b16 %v713
    %v874 = vunpack.c.l.b16 %v714
    %v875 = vunpack.c.l.b16 %v715
    %v876 = vunpack.c.l.b16 %v716
    %v877 = vunpack.c.l.b16 %v717
    %v878 = vunpack.c.l.b16 %v718
    %v879 = vunpack.c.l.b16 %v719
    %v880 = vunpack.c.l.b16 %v720
    %v881 = vunpack.c.l.b16 %v721
    %v882 = vunpack.c.l.b16 %v722
    %v883 = vunpack.c.l.b16 %v723
    %v884 = vunpack.c.l.b16 %v724
    %v885 = vunpack.c.l.b16 %v725
    %v886 = vunpack.c.l.b16 %v726
    %v887 = vunpack.c.l.b16 %v727
    %v888 = vunpack.c.l.b16 %v728
    %v889 = vunpack.c.l.b16 %v729
    %v890 = vunpack.c.l.b16 %v730
    %v891 = vunpack.c.l.b16 %v731
    %v892 = vunpack.c.l.b16 %v732
    %v893 = vunpack.c.l.b16 %v733
    %v894 = vunpack.c.l.b16 %v734
    %v895 = vunpack.c.l.b16 %v735
    %v896 = vunpack.c.l.b16 %v736
    %v897 = vunpack.c.l.b16 %v737
    %v898 = vunpack.c.l.b16 %v738
    %v899 = vunpack.c.l.b16 %v739
    %v900 = vunpack.c.l.b16 %v740
    %v901 = vunpack.c.l.b16 %v741
    %v902 = vunpack.c.l.b16 %v742
    %v903 = vunpack.c.l.b16 %v743
    %v904 = vunpack.c.l.b16 %v744
    %v905 = vpack.c.b16 %v826, %v825
    %v906 = vpack.c.b16 %v828, %v827
    %v907 = vpack.c.b16 %v830, %v829
    %v908 = vpack.c.b16 %v832, %v831
    %v909 = vpack.c.b16 %v834, %v833
    %v910 = vpack.c.b16 %v836, %v835
    %v911 = vpack.c.b16 %v838, %v837
    %v912 = vpack.c.b16 %v840, %v839
    %v913 = vpack.c.b16 %v842, %v841
    %v914 = vpack.c.b16 %v844, %v843
    %v915 = vpack.c.b16 %v846, %v845
    %v916 = vpack.c.b16 %v848, %v847
    %v917 = vpack.c.b16 %v850, %v849
    %v918 = vpack.c.b16 %v852, %v851
    %v919 = vpack.c.b16 %v854, %v853
    %v920 = vpack.c.b16 %v856, %v855
    %v921 = vpack.c.b16 %v858, %v857
    %v922 = vpack.c.b16 %v860, %v859
    %v923 = vpack.c.b16 %v862, %v861
    %v924 = vpack.c.b16 %v864, %v863
    %v925 = vpack.c.b16 %v866, %v865
    %v926 = vpack.c.b16 %v868, %v867
    %v927 = vpack.c.b16 %v870, %v869
    %v928 = vpack.c.b16 %v872, %v871
    %v929 = vpack.c.b16 %v874, %v873
    %v930 = vpack.c.b16 %v876, %v875
    %v931 = vpack.c.b16 %v878, %v877
    %v932 = vpack.c.b16 %v880, %v879
    %v933 = vpack.c.b16 %v882, %v881
    %v934 = vpack.c.b16 %v884, %v883
    %v935 = vpack.c.b16 %v886, %v885
    %v936 = vpack.c.b16 %v888, %v887
    %v937 = vpack.c.b16 %v890, %v889
    %v938 = vpack.c.b16 %v892, %v891
    %v939 = vpack.c.b16 %v894, %v893
    %v940 = vpack.c.b16 %v896, %v895
    %v941 = vpack.c.b16 %v898, %v897
    %v942 = vpack.c.b16 %v900, %v899
    %v943 = vpack.c.b16 %v902, %v901
    %v944 = vpack.c.b16 %v904, %v903
    %985 = vmatprep.subr.bf16.mxu0 0
    %986 = vmatpush1.bf16.msra.mxu0 %v905
    %987 = vmatprep.subr.bf16.mxu0 0
    %988 = vmatpush1.bf16.msra.mxu0 %v906
    %989 = vmatprep.subr.bf16.mxu0 0
    %990 = vmatpush1.bf16.msra.mxu0 %v907
    %991 = vmatprep.subr.bf16.mxu0 0
    %992 = vmatpush1.bf16.msra.mxu0 %v908
    %993 = vmatprep.subr.bf16.mxu0 0
    %994 = vmatpush1.bf16.msra.mxu0 %v909
    %995 = vmatprep.subr.bf16.mxu0 0
    %996 = vmatpush1.bf16.msra.mxu0 %v910
    %997 = vmatprep.subr.bf16.mxu0 0
    %998 = vmatpush1.bf16.msra.mxu0 %v911
    %999 = vmatprep.subr.bf16.mxu0 0
    %1000 = vmatpush1.bf16.msra.mxu0 %v912
    %1001 = vmatprep.subr.bf16.mxu0 0
    %1002 = vmatpush1.bf16.msra.mxu0 %v913
    %1003 = vmatprep.subr.bf16.mxu0 0
    %1004 = vmatpush1.bf16.msra.mxu0 %v914
    %1005 = vmatprep.subr.bf16.mxu0 0
    %1006 = vmatpush1.bf16.msra.mxu0 %v915
    %1007 = vmatprep.subr.bf16.mxu0 0
    %1008 = vmatpush1.bf16.msra.mxu0 %v916
    %1009 = vmatprep.subr.bf16.mxu0 0
    %1010 = vmatpush1.bf16.msra.mxu0 %v917
    %1011 = vmatprep.subr.bf16.mxu0 0
    %1012 = vmatpush1.bf16.msra.mxu0 %v918
    %1013 = vmatprep.subr.bf16.mxu0 0
    %1014 = vmatpush1.bf16.msra.mxu0 %v919
    %1015 = vmatprep.subr.bf16.mxu0 0
    %1016 = vmatpush1.bf16.msra.mxu0 %v920
    %1017 = vmatprep.mubr.bf16.mxu0 %v264
    %1018 = vmatmul.mubr.bf16.gmra.mrb[0].mxu0 %v160
    %v1019 = vpop.f32.mrb[0].mxu0
    %v1020 = vadd.f32 0.0, %v1019
    %v1021 = vpop.f32.mrb[0].mxu0
    %v1022 = vpop.f32.mrb[0].mxu0
    %v1023 = vadd.f32 0.0, %v1022
    %v1024 = vpop.f32.mrb[0].mxu0
    %1025 = vmatprep.mubr.bf16.mxu0 %v265
    %1026 = vmatmul.mubr.bf16.gmra.mrb[0].mxu0 %v161
    %v1027 = vpop.f32.mrb[0].mxu0
    %v1028 = vadd.f32 0.0, %v1027
    %v1029 = vpop.f32.mrb[0].mxu0
    %v1030 = vpop.f32.mrb[0].mxu0
    %v1031 = vadd.f32 0.0, %v1030
    %v1032 = vpop.f32.mrb[0].mxu0
    %1033 = vmatprep.mubr.bf16.mxu0 %v266
    %1034 = vmatmul.mubr.bf16.gmra.mrb[0].mxu0 %v162
    %v1035 = vpop.f32.mrb[0].mxu0
    %v1036 = vadd.f32 0.0, %v1035
    %v1037 = vpop.f32.mrb[0].mxu0
    %v1038 = vpop.f32.mrb[0].mxu0
    %v1039 = vadd.f32 0.0, %v1038
    %v1040 = vpop.f32.mrb[0].mxu0
    %1041 = vmatprep.mubr.bf16.mxu0 %v267
    %1042 = vmatmul.mubr.bf16.gmra.mrb[0].mxu0 %v163
    %v1043 = vpop.f32.mrb[0].mxu0
    %v1044 = vadd.f32 0.0, %v1043
    %v1045 = vpop.f32.mrb[0].mxu0
    %v1046 = vpop.f32.mrb[0].mxu0
    %v1047 = vadd.f32 0.0, %v1046
    %v1048 = vpop.f32.mrb[0].mxu0
    %1049 = vmatprep.mubr.bf16.mxu0 %v268
    %1050 = vmatmul.mubr.bf16.gmra.mrb[0].mxu0 %v164
    %v1051 = vpop.f32.mrb[0].mxu0
    %v1052 = vadd.f32 0.0, %v1051
    %v1053 = vpop.f32.mrb[0].mxu0
    %v1054 = vpop.f32.mrb[0].mxu0
    %v1055 = vadd.f32 0.0, %v1054
    %v1056 = vpop.f32.mrb[0].mxu0
    %1057 = vmatprep.mubr.bf16.mxu0 %v269
    %1058 = vmatmul.mubr.bf16.gmra.mrb[0].mxu0 %v165
    %v1059 = vpop.f32.mrb[0].mxu0
    %v1060 = vadd.f32 0.0, %v1059
    %v1061 = vpop.f32.mrb[0].mxu0
    %v1062 = vpop.f32.mrb[0].mxu0
    %v1063 = vadd.f32 0.0, %v1062
    %v1064 = vpop.f32.mrb[0].mxu0
    %1065 = vmatprep.mubr.bf16.mxu0 %v270
    %1066 = vmatmul.mubr.bf16.gmra.mrb[0].mxu0 %v166
    %v1067 = vpop.f32.mrb[0].mxu0
    %v1068 = vadd.f32 0.0, %v1067
    %v1069 = vpop.f32.mrb[0].mxu0
    %v1070 = vpop.f32.mrb[0].mxu0
    %v1071 = vadd.f32 0.0, %v1070
    %v1072 = vpop.f32.mrb[0].mxu0
    %1073 = vmatprep.mubr.bf16.mxu0 %v271
    %1074 = vmatmul.mubr.bf16.gmra.mrb[0].mxu0 %v167
    %v1075 = vpop.f32.mrb[0].mxu0
    %v1076 = vadd.f32 0.0, %v1075
    %v1077 = vpop.f32.mrb[0].mxu0
    %v1078 = vpop.f32.mrb[0].mxu0
    %v1079 = vadd.f32 0.0, %v1078
    %v1080 = vpop.f32.mrb[0].mxu0
    %1081 = vdwg.mxu0
    %1082 = vmatprep.subr.bf16.mxu0 0
    %1083 = vmatpush1.bf16.msra.mxu0 %v921
    %1084 = vmatprep.subr.bf16.mxu0 0
    %1085 = vmatpush1.bf16.msra.mxu0 %v922
    %1086 = vmatprep.subr.bf16.mxu0 0
    %1087 = vmatpush1.bf16.msra.mxu0 %v923
    %1088 = vmatprep.subr.bf16.mxu0 0
    %1089 = vmatpush1.bf16.msra.mxu0 %v924
    %1090 = vmatprep.subr.bf16.mxu0 0
    %1091 = vmatpush1.bf16.msra.mxu0 %v925
    %1092 = vmatprep.subr.bf16.mxu0 0
    %1093 = vmatpush1.bf16.msra.mxu0 %v926
    %1094 = vmatprep.subr.bf16.mxu0 0
    %1095 = vmatpush1.bf16.msra.mxu0 %v927
    %1096 = vmatprep.subr.bf16.mxu0 0
    %1097 = vmatpush1.bf16.msra.mxu0 %v928
    %1098 = vmatprep.subr.bf16.mxu0 0
    %1099 = vmatpush1.bf16.msra.mxu0 %v929
    %1100 = vmatprep.subr.bf16.mxu0 0
    %1101 = vmatpush1.bf16.msra.mxu0 %v930
    %1102 = vmatprep.subr.bf16.mxu0 0
    %1103 = vmatpush1.bf16.msra.mxu0 %v931
    %1104 = vmatprep.subr.bf16.mxu0 0
    %1105 = vmatpush1.bf16.msra.mxu0 %v932
    %1106 = vmatprep.subr.bf16.mxu0 0
    %1107 = vmatpush1.bf16.msra.mxu0 %v933
    %1108 = vmatprep.subr.bf16.mxu0 0
    %1109 = vmatpush1.bf16.msra.mxu0 %v934
    %1110 = vmatprep.subr.bf16.mxu0 0
    %1111 = vmatpush1.bf16.msra.mxu0 %v935
    %1112 = vmatprep.subr.bf16.mxu0 0
    %1113 = vmatpush1.bf16.msra.mxu0 %v936
    %1114 = vmatprep.mubr.bf16.mxu0 %v472
    %1115 = vmatmul.mubr.bf16.gmra.mrb[0].mxu0 %v368
    %v1116 = vpop.f32.mrb[0].mxu0
    %v1117 = vadd.f32 %v1020, %v1116
    %v1118 = vpop.f32.mrb[0].mxu0
    %v1119 = vpop.f32.mrb[0].mxu0
    %v1120 = vadd.f32 %v1023, %v1119
    %v1121 = vpop.f32.mrb[0].mxu0
    %1122 = vmatprep.mubr.bf16.mxu0 %v473
    %1123 = vmatmul.mubr.bf16.gmra.mrb[0].mxu0 %v369
    %v1124 = vpop.f32.mrb[0].mxu0
    %v1125 = vadd.f32 %v1028, %v1124
    %v1126 = vpop.f32.mrb[0].mxu0
    %v1127 = vpop.f32.mrb[0].mxu0
    %v1128 = vadd.f32 %v1031, %v1127
    %v1129 = vpop.f32.mrb[0].mxu0
    %1130 = vmatprep.mubr.bf16.mxu0 %v474
    %1131 = vmatmul.mubr.bf16.gmra.mrb[0].mxu0 %v370
    %v1132 = vpop.f32.mrb[0].mxu0
    %v1133 = vadd.f32 %v1036, %v1132
    %v1134 = vpop.f32.mrb[0].mxu0
    %v1135 = vpop.f32.mrb[0].mxu0
    %v1136 = vadd.f32 %v1039, %v1135
    %v1137 = vpop.f32.mrb[0].mxu0
    %1138 = vmatprep.mubr.bf16.mxu0 %v475
    %1139 = vmatmul.mubr.bf16.gmra.mrb[0].mxu0 %v371
    %v1140 = vpop.f32.mrb[0].mxu0
    %v1141 = vadd.f32 %v1044, %v1140
    %v1142 = vpop.f32.mrb[0].mxu0
    %v1143 = vpop.f32.mrb[0].mxu0
    %v1144 = vadd.f32 %v1047, %v1143
    %v1145 = vpop.f32.mrb[0].mxu0
    %1146 = vmatprep.mubr.bf16.mxu0 %v476
    %1147 = vmatmul.mubr.bf16.gmra.mrb[0].mxu0 %v372
    %v1148 = vpop.f32.mrb[0].mxu0
    %v1149 = vadd.f32 %v1052, %v1148
    %v1150 = vpop.f32.mrb[0].mxu0
    %v1151 = vpop.f32.mrb[0].mxu0
    %v1152 = vadd.f32 %v1055, %v1151
    %v1153 = vpop.f32.mrb[0].mxu0
    %1154 = vmatprep.mubr.bf16.mxu0 %v477
    %1155 = vmatmul.mubr.bf16.gmra.mrb[0].mxu0 %v373
    %v1156 = vpop.f32.mrb[0].mxu0
    %v1157 = vadd.f32 %v1060, %v1156
    %v1158 = vpop.f32.mrb[0].mxu0
    %v1159 = vpop.f32.mrb[0].mxu0
    %v1160 = vadd.f32 %v1063, %v1159
    %v1161 = vpop.f32.mrb[0].mxu0
    %1162 = vmatprep.mubr.bf16.mxu0 %v478
    %1163 = vmatmul.mubr.bf16.gmra.mrb[0].mxu0 %v374
    %v1164 = vpop.f32.mrb[0].mxu0
    %v1165 = vadd.f32 %v1068, %v1164
    %v1166 = vpop.f32.mrb[0].mxu0
    %v1167 = vpop.f32.mrb[0].mxu0
    %v1168 = vadd.f32 %v1071, %v1167
    %v1169 = vpop.f32.mrb[0].mxu0
    %1170 = vmatprep.mubr.bf16.mxu0 %v479
    %1171 = vmatmul.mubr.bf16.gmra.mrb[0].mxu0 %v375
    %v1172 = vpop.f32.mrb[0].mxu0
    %v1173 = vadd.f32 %v1076, %v1172
    %v1174 = vpop.f32.mrb[0].mxu0
    %v1175 = vpop.f32.mrb[0].mxu0
    %v1176 = vadd.f32 %v1079, %v1175
    %v1177 = vpop.f32.mrb[0].mxu0
    %1178 = vdwg.mxu0
    %1179 = vmatprep.subr.bf16.mxu0 0
    %1180 = vmatpush1.bf16.msra.mxu0 %v937
    %1181 = vmatprep.subr.bf16.mxu0 0
    %1182 = vmatpush1.bf16.msra.mxu0 %v938
    %1183 = vmatprep.subr.bf16.mxu0 0
    %1184 = vmatpush1.bf16.msra.mxu0 %v939
    %1185 = vmatprep.subr.bf16.mxu0 0
    %1186 = vmatpush1.bf16.msra.mxu0 %v940
    %1187 = vmatprep.subr.bf16.mxu0 0
    %1188 = vmatpush1.bf16.msra.mxu0 %v941
    %1189 = vmatprep.subr.bf16.mxu0 0
    %1190 = vmatpush1.bf16.msra.mxu0 %v942
    %1191 = vmatprep.subr.bf16.mxu0 0
    %1192 = vmatpush1.bf16.msra.mxu0 %v943
    %1193 = vmatprep.subr.bf16.mxu0 0
    %1194 = vmatpush1.bf16.msra.mxu0 %v944
    %1195 = vmatprep.subr.bf16.mxu0 0
    %1196 = vmatpush1.bf16.msra.mxu0 0
    %1197 = vmatprep.subr.bf16.mxu0 0
    %1198 = vmatpush1.bf16.msra.mxu0 0
    %1199 = vmatprep.subr.bf16.mxu0 0
    %1200 = vmatpush1.bf16.msra.mxu0 0
    %1201 = vmatprep.subr.bf16.mxu0 0
    %1202 = vmatpush1.bf16.msra.mxu0 0
    %1203 = vmatprep.subr.bf16.mxu0 0
    %1204 = vmatpush1.bf16.msra.mxu0 0
    %1205 = vmatprep.subr.bf16.mxu0 0
    %1206 = vmatpush1.bf16.msra.mxu0 0
    %1207 = vmatprep.subr.bf16.mxu0 0
    %1208 = vmatpush1.bf16.msra.mxu0 0
    %1209 = vmatprep.subr.bf16.mxu0 0
    %1210 = vmatpush1.bf16.msra.mxu0 0
    %1211 = vmatprep.mubr.bf16.mxu0 0
    %1212 = vmatmul.mubr.bf16.gmra.mrb[0].mxu0 %v576
    %v1213 = vpop.f32.mrb[0].mxu0
    %v1214 = vadd.f32 %v1117, %v1213
    %v1215 = vpop.f32.mrb[0].mxu0
    %v1216 = vpop.f32.mrb[0].mxu0
    %v1217 = vadd.f32 %v1120, %v1216
    %v1218 = vpop.f32.mrb[0].mxu0
    %1219 = vmatprep.mubr.bf16.mxu0 0
    %1220 = vmatmul.mubr.bf16.gmra.mrb[0].mxu0 %v577
    %v1221 = vpop.f32.mrb[0].mxu0
    %v1222 = vadd.f32 %v1125, %v1221
    %v1223 = vpop.f32.mrb[0].mxu0
    %v1224 = vpop.f32.mrb[0].mxu0
    %v1225 = vadd.f32 %v1128, %v1224
    %v1226 = vpop.f32.mrb[0].mxu0
    %1227 = vmatprep.mubr.bf16.mxu0 0
    %1228 = vmatmul.mubr.bf16.gmra.mrb[0].mxu0 %v578
    %v1229 = vpop.f32.mrb[0].mxu0
    %v1230 = vadd.f32 %v1133, %v1229
    %v1231 = vpop.f32.mrb[0].mxu0
    %v1232 = vpop.f32.mrb[0].mxu0
    %v1233 = vadd.f32 %v1136, %v1232
    %v1234 = vpop.f32.mrb[0].mxu0
    %1235 = vmatprep.mubr.bf16.mxu0 0
    %1236 = vmatmul.mubr.bf16.gmra.mrb[0].mxu0 %v579
    %v1237 = vpop.f32.mrb[0].mxu0
    %v1238 = vadd.f32 %v1141, %v1237
    %v1239 = vpop.f32.mrb[0].mxu0
    %v1240 = vpop.f32.mrb[0].mxu0
    %v1241 = vadd.f32 %v1144, %v1240
    %v1242 = vpop.f32.mrb[0].mxu0
    %1243 = vmatprep.mubr.bf16.mxu0 0
    %1244 = vmatmul.mubr.bf16.gmra.mrb[0].mxu0 %v580
    %v1245 = vpop.f32.mrb[0].mxu0
    %v1246 = vadd.f32 %v1149, %v1245
    %v1247 = vpop.f32.mrb[0].mxu0
    %v1248 = vpop.f32.mrb[0].mxu0
    %v1249 = vadd.f32 %v1152, %v1248
    %v1250 = vpop.f32.mrb[0].mxu0
    %1251 = vmatprep.mubr.bf16.mxu0 0
    %1252 = vmatmul.mubr.bf16.gmra.mrb[0].mxu0 %v581
    %v1253 = vpop.f32.mrb[0].mxu0
    %v1254 = vadd.f32 %v1157, %v1253
    %v1255 = vpop.f32.mrb[0].mxu0
    %v1256 = vpop.f32.mrb[0].mxu0
    %v1257 = vadd.f32 %v1160, %v1256
    %v1258 = vpop.f32.mrb[0].mxu0
    %1259 = vmatprep.mubr.bf16.mxu0 0
    %1260 = vmatmul.mubr.bf16.gmra.mrb[0].mxu0 %v582
    %v1261 = vpop.f32.mrb[0].mxu0
    %v1262 = vadd.f32 %v1165, %v1261
    %v1263 = vpop.f32.mrb[0].mxu0
    %v1264 = vpop.f32.mrb[0].mxu0
    %v1265 = vadd.f32 %v1168, %v1264
    %v1266 = vpop.f32.mrb[0].mxu0
    %1267 = vmatprep.mubr.bf16.mxu0 0
    %1268 = vmatmul.mubr.bf16.gmra.mrb[0].mxu0 %v583
    %v1269 = vpop.f32.mrb[0].mxu0
    %v1270 = vadd.f32 %v1173, %v1269
    %v1271 = vpop.f32.mrb[0].mxu0
    %v1272 = vpop.f32.mrb[0].mxu0
    %v1273 = vadd.f32 %v1176, %v1272
    %v1274 = vpop.f32.mrb[0].mxu0
    %1275 = vdwg.mxu0
    %v1356 = vunpack.c.l.b16 %v584
    %v1357 = vunpack.c.l.b16 %v585
    %v1358 = vunpack.c.l.b16 %v586
    %v1359 = vunpack.c.l.b16 %v587
    %v1360 = vunpack.c.l.b16 %v588
    %v1361 = vunpack.c.l.b16 %v589
    %v1362 = vunpack.c.l.b16 %v590
    %v1363 = vunpack.c.l.b16 %v591
    %v1364 = vunpack.c.l.b16 %v592
    %v1365 = vunpack.c.l.b16 %v593
    %v1366 = vunpack.c.l.b16 %v594
    %v1367 = vunpack.c.l.b16 %v595
    %v1368 = vunpack.c.l.b16 %v596
    %v1369 = vunpack.c.l.b16 %v597
    %v1370 = vunpack.c.l.b16 %v598
    %v1371 = vunpack.c.l.b16 %v599
    %v1372 = vunpack.c.l.b16 %v600
    %v1373 = vunpack.c.l.b16 %v601
    %v1374 = vunpack.c.l.b16 %v602
    %v1375 = vunpack.c.l.b16 %v603
    %v1376 = vunpack.c.l.b16 %v604
    %v1377 = vunpack.c.l.b16 %v605
    %v1378 = vunpack.c.l.b16 %v606
    %v1379 = vunpack.c.l.b16 %v607
    %v1380 = vunpack.c.l.b16 %v608
    %v1381 = vunpack.c.l.b16 %v609
    %v1382 = vunpack.c.l.b16 %v610
    %v1383 = vunpack.c.l.b16 %v611
    %v1384 = vunpack.c.l.b16 %v612
    %v1385 = vunpack.c.l.b16 %v613
    %v1386 = vunpack.c.l.b16 %v614
    %v1387 = vunpack.c.l.b16 %v615
    %v1388 = vunpack.c.l.b16 %v616
    %v1389 = vunpack.c.l.b16 %v617
    %v1390 = vunpack.c.l.b16 %v618
    %v1391 = vunpack.c.l.b16 %v619
    %v1392 = vunpack.c.l.b16 %v620
    %v1393 = vunpack.c.l.b16 %v621
    %v1394 = vunpack.c.l.b16 %v622
    %v1395 = vunpack.c.l.b16 %v623
    %v1396 = vunpack.c.l.b16 %v624
    %v1397 = vunpack.c.l.b16 %v625
    %v1398 = vunpack.c.l.b16 %v626
    %v1399 = vunpack.c.l.b16 %v627
    %v1400 = vunpack.c.l.b16 %v628
    %v1401 = vunpack.c.l.b16 %v629
    %v1402 = vunpack.c.l.b16 %v630
    %v1403 = vunpack.c.l.b16 %v631
    %v1404 = vunpack.c.l.b16 %v632
    %v1405 = vunpack.c.l.b16 %v633
    %v1406 = vunpack.c.l.b16 %v634
    %v1407 = vunpack.c.l.b16 %v635
    %v1408 = vunpack.c.l.b16 %v636
    %v1409 = vunpack.c.l.b16 %v637
    %v1410 = vunpack.c.l.b16 %v638
    %v1411 = vunpack.c.l.b16 %v639
    %v1412 = vunpack.c.l.b16 %v640
    %v1413 = vunpack.c.l.b16 %v641
    %v1414 = vunpack.c.l.b16 %v642
    %v1415 = vunpack.c.l.b16 %v643
    %v1416 = vunpack.c.l.b16 %v644
    %v1417 = vunpack.c.l.b16 %v645
    %v1418 = vunpack.c.l.b16 %v646
    %v1419 = vunpack.c.l.b16 %v647
    %v1420 = vunpack.c.l.b16 %v648
    %v1421 = vunpack.c.l.b16 %v649
    %v1422 = vunpack.c.l.b16 %v650
    %v1423 = vunpack.c.l.b16 %v651
    %v1424 = vunpack.c.l.b16 %v652
    %v1425 = vunpack.c.l.b16 %v653
    %v1426 = vunpack.c.l.b16 %v654
    %v1427 = vunpack.c.l.b16 %v655
    %v1428 = vunpack.c.l.b16 %v656
    %v1429 = vunpack.c.l.b16 %v657
    %v1430 = vunpack.c.l.b16 %v658
    %v1431 = vunpack.c.l.b16 %v659
    %v1432 = vunpack.c.l.b16 %v660
    %v1433 = vunpack.c.l.b16 %v661
    %v1434 = vunpack.c.l.b16 %v662
    %v1435 = vunpack.c.l.b16 %v663
    %v1436 = vpack.c.b16 %v1357, %v1356
    %v1437 = vpack.c.b16 %v1359, %v1358
    %v1438 = vpack.c.b16 %v1361, %v1360
    %v1439 = vpack.c.b16 %v1363, %v1362
    %v1440 = vpack.c.b16 %v1365, %v1364
    %v1441 = vpack.c.b16 %v1367, %v1366
    %v1442 = vpack.c.b16 %v1369, %v1368
    %v1443 = vpack.c.b16 %v1371, %v1370
    %v1444 = vpack.c.b16 %v1373, %v1372
    %v1445 = vpack.c.b16 %v1375, %v1374
    %v1446 = vpack.c.b16 %v1377, %v1376
    %v1447 = vpack.c.b16 %v1379, %v1378
    %v1448 = vpack.c.b16 %v1381, %v1380
    %v1449 = vpack.c.b16 %v1383, %v1382
    %v1450 = vpack.c.b16 %v1385, %v1384
    %v1451 = vpack.c.b16 %v1387, %v1386
    %v1452 = vpack.c.b16 %v1389, %v1388
    %v1453 = vpack.c.b16 %v1391, %v1390
    %v1454 = vpack.c.b16 %v1393, %v1392
    %v1455 = vpack.c.b16 %v1395, %v1394
    %v1456 = vpack.c.b16 %v1397, %v1396
    %v1457 = vpack.c.b16 %v1399, %v1398
    %v1458 = vpack.c.b16 %v1401, %v1400
    %v1459 = vpack.c.b16 %v1403, %v1402
    %v1460 = vpack.c.b16 %v1405, %v1404
    %v1461 = vpack.c.b16 %v1407, %v1406
    %v1462 = vpack.c.b16 %v1409, %v1408
    %v1463 = vpack.c.b16 %v1411, %v1410
    %v1464 = vpack.c.b16 %v1413, %v1412
    %v1465 = vpack.c.b16 %v1415, %v1414
    %v1466 = vpack.c.b16 %v1417, %v1416
    %v1467 = vpack.c.b16 %v1419, %v1418
    %v1468 = vpack.c.b16 %v1421, %v1420
    %v1469 = vpack.c.b16 %v1423, %v1422
    %v1470 = vpack.c.b16 %v1425, %v1424
    %v1471 = vpack.c.b16 %v1427, %v1426
    %v1472 = vpack.c.b16 %v1429, %v1428
    %v1473 = vpack.c.b16 %v1431, %v1430
    %v1474 = vpack.c.b16 %v1433, %v1432
    %v1475 = vpack.c.b16 %v1435, %v1434
    %1516 = vmatprep.subr.bf16.mxu0 0
    %1517 = vmatpush1.bf16.msra.mxu0 %v1436
    %1518 = vmatprep.subr.bf16.mxu0 0
    %1519 = vmatpush1.bf16.msra.mxu0 %v1437
    %1520 = vmatprep.subr.bf16.mxu0 0
    %1521 = vmatpush1.bf16.msra.mxu0 %v1438
    %1522 = vmatprep.subr.bf16.mxu0 0
    %1523 = vmatpush1.bf16.msra.mxu0 %v1439
    %1524 = vmatprep.subr.bf16.mxu0 0
    %1525 = vmatpush1.bf16.msra.mxu0 %v1440
    %1526 = vmatprep.subr.bf16.mxu0 0
    %1527 = vmatpush1.bf16.msra.mxu0 %v1441
    %1528 = vmatprep.subr.bf16.mxu0 0
    %1529 = vmatpush1.bf16.msra.mxu0 %v1442
    %1530 = vmatprep.subr.bf16.mxu0 0
    %1531 = vmatpush1.bf16.msra.mxu0 %v1443
    %1532 = vmatprep.subr.bf16.mxu0 0
    %1533 = vmatpush1.bf16.msra.mxu0 %v1444
    %1534 = vmatprep.subr.bf16.mxu0 0
    %1535 = vmatpush1.bf16.msra.mxu0 %v1445
    %1536 = vmatprep.subr.bf16.mxu0 0
    %1537 = vmatpush1.bf16.msra.mxu0 %v1446
    %1538 = vmatprep.subr.bf16.mxu0 0
    %1539 = vmatpush1.bf16.msra.mxu0 %v1447
    %1540 = vmatprep.subr.bf16.mxu0 0
    %1541 = vmatpush1.bf16.msra.mxu0 %v1448
    %1542 = vmatprep.subr.bf16.mxu0 0
    %1543 = vmatpush1.bf16.msra.mxu0 %v1449
    %1544 = vmatprep.subr.bf16.mxu0 0
    %1545 = vmatpush1.bf16.msra.mxu0 %v1450
    %1546 = vmatprep.subr.bf16.mxu0 0
    %1547 = vmatpush1.bf16.msra.mxu0 %v1451
    %1548 = vmatprep.mubr.bf16.mxu0 %v264
    %1549 = vmatmul.mubr.bf16.gmra.mrb[0].mxu0 %v160
    %v1550 = vpop.f32.mrb[0].mxu0
    %v1551 = vadd.f32 %v1214, %v1550
    %v1552 = vpop.f32.mrb[0].mxu0
    %v1553 = vpop.f32.mrb[0].mxu0
    %v1554 = vadd.f32 %v1217, %v1553
    %v1555 = vpop.f32.mrb[0].mxu0
    %1556 = vmatprep.mubr.bf16.mxu0 %v265
    %1557 = vmatmul.mubr.bf16.gmra.mrb[0].mxu0 %v161
    %v1558 = vpop.f32.mrb[0].mxu0
    %v1559 = vadd.f32 %v1222, %v1558
    %v1560 = vpop.f32.mrb[0].mxu0
    %v1561 = vpop.f32.mrb[0].mxu0
    %v1562 = vadd.f32 %v1225, %v1561
    %v1563 = vpop.f32.mrb[0].mxu0
    %1564 = vmatprep.mubr.bf16.mxu0 %v266
    %1565 = vmatmul.mubr.bf16.gmra.mrb[0].mxu0 %v162
    %v1566 = vpop.f32.mrb[0].mxu0
    %v1567 = vadd.f32 %v1230, %v1566
    %v1568 = vpop.f32.mrb[0].mxu0
    %v1569 = vpop.f32.mrb[0].mxu0
    %v1570 = vadd.f32 %v1233, %v1569
    %v1571 = vpop.f32.mrb[0].mxu0
    %1572 = vmatprep.mubr.bf16.mxu0 %v267
    %1573 = vmatmul.mubr.bf16.gmra.mrb[0].mxu0 %v163
    %v1574 = vpop.f32.mrb[0].mxu0
    %v1575 = vadd.f32 %v1238, %v1574
    %v1576 = vpop.f32.mrb[0].mxu0
    %v1577 = vpop.f32.mrb[0].mxu0
    %v1578 = vadd.f32 %v1241, %v1577
    %v1579 = vpop.f32.mrb[0].mxu0
    %1580 = vmatprep.mubr.bf16.mxu0 %v268
    %1581 = vmatmul.mubr.bf16.gmra.mrb[0].mxu0 %v164
    %v1582 = vpop.f32.mrb[0].mxu0
    %v1583 = vadd.f32 %v1246, %v1582
    %v1584 = vpop.f32.mrb[0].mxu0
    %v1585 = vpop.f32.mrb[0].mxu0
    %v1586 = vadd.f32 %v1249, %v1585
    %v1587 = vpop.f32.mrb[0].mxu0
    %1588 = vmatprep.mubr.bf16.mxu0 %v269
    %1589 = vmatmul.mubr.bf16.gmra.mrb[0].mxu0 %v165
    %v1590 = vpop.f32.mrb[0].mxu0
    %v1591 = vadd.f32 %v1254, %v1590
    %v1592 = vpop.f32.mrb[0].mxu0
    %v1593 = vpop.f32.mrb[0].mxu0
    %v1594 = vadd.f32 %v1257, %v1593
    %v1595 = vpop.f32.mrb[0].mxu0
    %1596 = vmatprep.mubr.bf16.mxu0 %v270
    %1597 = vmatmul.mubr.bf16.gmra.mrb[0].mxu0 %v166
    %v1598 = vpop.f32.mrb[0].mxu0
    %v1599 = vadd.f32 %v1262, %v1598
    %v1600 = vpop.f32.mrb[0].mxu0
    %v1601 = vpop.f32.mrb[0].mxu0
    %v1602 = vadd.f32 %v1265, %v1601
    %v1603 = vpop.f32.mrb[0].mxu0
    %1604 = vmatprep.mubr.bf16.mxu0 %v271
    %1605 = vmatmul.mubr.bf16.gmra.mrb[0].mxu0 %v167
    %v1606 = vpop.f32.mrb[0].mxu0
    %v1607 = vadd.f32 %v1270, %v1606
    %v1608 = vpop.f32.mrb[0].mxu0
    %v1609 = vpop.f32.mrb[0].mxu0
    %v1610 = vadd.f32 %v1273, %v1609
    %v1611 = vpop.f32.mrb[0].mxu0
    %1612 = vdwg.mxu0
    %1613 = vmatprep.subr.bf16.mxu0 0
    %1614 = vmatpush1.bf16.msra.mxu0 %v1452
    %1615 = vmatprep.subr.bf16.mxu0 0
    %1616 = vmatpush1.bf16.msra.mxu0 %v1453
    %1617 = vmatprep.subr.bf16.mxu0 0
    %1618 = vmatpush1.bf16.msra.mxu0 %v1454
    %1619 = vmatprep.subr.bf16.mxu0 0
    %1620 = vmatpush1.bf16.msra.mxu0 %v1455
    %1621 = vmatprep.subr.bf16.mxu0 0
    %1622 = vmatpush1.bf16.msra.mxu0 %v1456
    %1623 = vmatprep.subr.bf16.mxu0 0
    %1624 = vmatpush1.bf16.msra.mxu0 %v1457
    %1625 = vmatprep.subr.bf16.mxu0 0
    %1626 = vmatpush1.bf16.msra.mxu0 %v1458
    %1627 = vmatprep.subr.bf16.mxu0 0
    %1628 = vmatpush1.bf16.msra.mxu0 %v1459
    %1629 = vmatprep.subr.bf16.mxu0 0
    %1630 = vmatpush1.bf16.msra.mxu0 %v1460
    %1631 = vmatprep.subr.bf16.mxu0 0
    %1632 = vmatpush1.bf16.msra.mxu0 %v1461
    %1633 = vmatprep.subr.bf16.mxu0 0
    %1634 = vmatpush1.bf16.msra.mxu0 %v1462
    %1635 = vmatprep.subr.bf16.mxu0 0
    %1636 = vmatpush1.bf16.msra.mxu0 %v1463
    %1637 = vmatprep.subr.bf16.mxu0 0
    %1638 = vmatpush1.bf16.msra.mxu0 %v1464
    %1639 = vmatprep.subr.bf16.mxu0 0
    %1640 = vmatpush1.bf16.msra.mxu0 %v1465
    %1641 = vmatprep.subr.bf16.mxu0 0
    %1642 = vmatpush1.bf16.msra.mxu0 %v1466
    %1643 = vmatprep.subr.bf16.mxu0 0
    %1644 = vmatpush1.bf16.msra.mxu0 %v1467
    %1645 = vmatprep.mubr.bf16.mxu0 %v472
    %1646 = vmatmul.mubr.bf16.gmra.mrb[0].mxu0 %v368
    %v1647 = vpop.f32.mrb[0].mxu0
    %v1648 = vadd.f32 %v1551, %v1647
    %v1649 = vpop.f32.mrb[0].mxu0
    %v1650 = vpop.f32.mrb[0].mxu0
    %v1651 = vadd.f32 %v1554, %v1650
    %v1652 = vpop.f32.mrb[0].mxu0
    %1653 = vmatprep.mubr.bf16.mxu0 %v473
    %1654 = vmatmul.mubr.bf16.gmra.mrb[0].mxu0 %v369
    %v1655 = vpop.f32.mrb[0].mxu0
    %v1656 = vadd.f32 %v1559, %v1655
    %v1657 = vpop.f32.mrb[0].mxu0
    %v1658 = vpop.f32.mrb[0].mxu0
    %v1659 = vadd.f32 %v1562, %v1658
    %v1660 = vpop.f32.mrb[0].mxu0
    %1661 = vmatprep.mubr.bf16.mxu0 %v474
    %1662 = vmatmul.mubr.bf16.gmra.mrb[0].mxu0 %v370
    %v1663 = vpop.f32.mrb[0].mxu0
    %v1664 = vadd.f32 %v1567, %v1663
    %v1665 = vpop.f32.mrb[0].mxu0
    %v1666 = vpop.f32.mrb[0].mxu0
    %v1667 = vadd.f32 %v1570, %v1666
    %v1668 = vpop.f32.mrb[0].mxu0
    %1669 = vmatprep.mubr.bf16.mxu0 %v475
    %1670 = vmatmul.mubr.bf16.gmra.mrb[0].mxu0 %v371
    %v1671 = vpop.f32.mrb[0].mxu0
    %v1672 = vadd.f32 %v1575, %v1671
    %v1673 = vpop.f32.mrb[0].mxu0
    %v1674 = vpop.f32.mrb[0].mxu0
    %v1675 = vadd.f32 %v1578, %v1674
    %v1676 = vpop.f32.mrb[0].mxu0
    %1677 = vmatprep.mubr.bf16.mxu0 %v476
    %1678 = vmatmul.mubr.bf16.gmra.mrb[0].mxu0 %v372
    %v1679 = vpop.f32.mrb[0].mxu0
    %v1680 = vadd.f32 %v1583, %v1679
    %v1681 = vpop.f32.mrb[0].mxu0
    %v1682 = vpop.f32.mrb[0].mxu0
    %v1683 = vadd.f32 %v1586, %v1682
    %v1684 = vpop.f32.mrb[0].mxu0
    %1685 = vmatprep.mubr.bf16.mxu0 %v477
    %1686 = vmatmul.mubr.bf16.gmra.mrb[0].mxu0 %v373
    %v1687 = vpop.f32.mrb[0].mxu0
    %v1688 = vadd.f32 %v1591, %v1687
    %v1689 = vpop.f32.mrb[0].mxu0
    %v1690 = vpop.f32.mrb[0].mxu0
    %v1691 = vadd.f32 %v1594, %v1690
    %v1692 = vpop.f32.mrb[0].mxu0
    %1693 = vmatprep.mubr.bf16.mxu0 %v478
    %1694 = vmatmul.mubr.bf16.gmra.mrb[0].mxu0 %v374
    %v1695 = vpop.f32.mrb[0].mxu0
    %v1696 = vadd.f32 %v1599, %v1695
    %v1697 = vpop.f32.mrb[0].mxu0
    %v1698 = vpop.f32.mrb[0].mxu0
    %v1699 = vadd.f32 %v1602, %v1698
    %v1700 = vpop.f32.mrb[0].mxu0
    %1701 = vmatprep.mubr.bf16.mxu0 %v479
    %1702 = vmatmul.mubr.bf16.gmra.mrb[0].mxu0 %v375
    %v1703 = vpop.f32.mrb[0].mxu0
    %v1704 = vadd.f32 %v1607, %v1703
    %v1705 = vpop.f32.mrb[0].mxu0
    %v1706 = vpop.f32.mrb[0].mxu0
    %v1707 = vadd.f32 %v1610, %v1706
    %v1708 = vpop.f32.mrb[0].mxu0
    %1709 = vdwg.mxu0
    %1710 = vmatprep.subr.bf16.mxu0 0
    %1711 = vmatpush1.bf16.msra.mxu0 %v1468
    %1712 = vmatprep.subr.bf16.mxu0 0
    %1713 = vmatpush1.bf16.msra.mxu0 %v1469
    %1714 = vmatprep.subr.bf16.mxu0 0
    %1715 = vmatpush1.bf16.msra.mxu0 %v1470
    %1716 = vmatprep.subr.bf16.mxu0 0
    %1717 = vmatpush1.bf16.msra.mxu0 %v1471
    %1718 = vmatprep.subr.bf16.mxu0 0
    %1719 = vmatpush1.bf16.msra.mxu0 %v1472
    %1720 = vmatprep.subr.bf16.mxu0 0
    %1721 = vmatpush1.bf16.msra.mxu0 %v1473
    %1722 = vmatprep.subr.bf16.mxu0 0
    %1723 = vmatpush1.bf16.msra.mxu0 %v1474
    %1724 = vmatprep.subr.bf16.mxu0 0
    %1725 = vmatpush1.bf16.msra.mxu0 %v1475
    %1726 = vmatprep.subr.bf16.mxu0 0
    %1727 = vmatpush1.bf16.msra.mxu0 0
    %1728 = vmatprep.subr.bf16.mxu0 0
    %1729 = vmatpush1.bf16.msra.mxu0 0
    %1730 = vmatprep.subr.bf16.mxu0 0
    %1731 = vmatpush1.bf16.msra.mxu0 0
    %1732 = vmatprep.subr.bf16.mxu0 0
    %1733 = vmatpush1.bf16.msra.mxu0 0
    %1734 = vmatprep.subr.bf16.mxu0 0
    %1735 = vmatpush1.bf16.msra.mxu0 0
    %1736 = vmatprep.subr.bf16.mxu0 0
    %1737 = vmatpush1.bf16.msra.mxu0 0
    %1738 = vmatprep.subr.bf16.mxu0 0
    %1739 = vmatpush1.bf16.msra.mxu0 0
    %1740 = vmatprep.subr.bf16.mxu0 0
    %1741 = vmatpush1.bf16.msra.mxu0 0
    %1742 = vmatprep.mubr.bf16.mxu0 0
    %1743 = vmatmul.mubr.bf16.gmra.mrb[0].mxu0 %v576
    %v1744 = vpop.f32.mrb[0].mxu0
    %v1745 = vadd.f32 %v1648, %v1744
    %v1746 = vpop.f32.mrb[0].mxu0
    %v1747 = vpop.f32.mrb[0].mxu0
    %v1748 = vadd.f32 %v1651, %v1747
    %v1749 = vpop.f32.mrb[0].mxu0
    %1750 = vmatprep.mubr.bf16.mxu0 0
    %1751 = vmatmul.mubr.bf16.gmra.mrb[0].mxu0 %v577
    %v1752 = vpop.f32.mrb[0].mxu0
    %v1753 = vadd.f32 %v1656, %v1752
    %v1754 = vpop.f32.mrb[0].mxu0
    %v1755 = vpop.f32.mrb[0].mxu0
    %v1756 = vadd.f32 %v1659, %v1755
    %v1757 = vpop.f32.mrb[0].mxu0
    %1758 = vmatprep.mubr.bf16.mxu0 0
    %1759 = vmatmul.mubr.bf16.gmra.mrb[0].mxu0 %v578
    %v1760 = vpop.f32.mrb[0].mxu0
    %v1761 = vadd.f32 %v1664, %v1760
    %v1762 = vpop.f32.mrb[0].mxu0
    %v1763 = vpop.f32.mrb[0].mxu0
    %v1764 = vadd.f32 %v1667, %v1763
    %v1765 = vpop.f32.mrb[0].mxu0
    %1766 = vmatprep.mubr.bf16.mxu0 0
    %1767 = vmatmul.mubr.bf16.gmra.mrb[0].mxu0 %v579
    %v1768 = vpop.f32.mrb[0].mxu0
    %v1769 = vadd.f32 %v1672, %v1768
    %v1770 = vpop.f32.mrb[0].mxu0
    %v1771 = vpop.f32.mrb[0].mxu0
    %v1772 = vadd.f32 %v1675, %v1771
    %v1773 = vpop.f32.mrb[0].mxu0
    %1774 = vmatprep.mubr.bf16.mxu0 0
    %1775 = vmatmul.mubr.bf16.gmra.mrb[0].mxu0 %v580
    %v1776 = vpop.f32.mrb[0].mxu0
    %v1777 = vadd.f32 %v1680, %v1776
    %v1778 = vpop.f32.mrb[0].mxu0
    %v1779 = vpop.f32.mrb[0].mxu0
    %v1780 = vadd.f32 %v1683, %v1779
    %v1781 = vpop.f32.mrb[0].mxu0
    %1782 = vmatprep.mubr.bf16.mxu0 0
    %1783 = vmatmul.mubr.bf16.gmra.mrb[0].mxu0 %v581
    %v1784 = vpop.f32.mrb[0].mxu0
    %v1785 = vadd.f32 %v1688, %v1784
    %v1786 = vpop.f32.mrb[0].mxu0
    %v1787 = vpop.f32.mrb[0].mxu0
    %v1788 = vadd.f32 %v1691, %v1787
    %v1789 = vpop.f32.mrb[0].mxu0
    %1790 = vmatprep.mubr.bf16.mxu0 0
    %1791 = vmatmul.mubr.bf16.gmra.mrb[0].mxu0 %v582
    %v1792 = vpop.f32.mrb[0].mxu0
    %v1793 = vadd.f32 %v1696, %v1792
    %v1794 = vpop.f32.mrb[0].mxu0
    %v1795 = vpop.f32.mrb[0].mxu0
    %v1796 = vadd.f32 %v1699, %v1795
    %v1797 = vpop.f32.mrb[0].mxu0
    %1798 = vmatprep.mubr.bf16.mxu0 0
    %1799 = vmatmul.mubr.bf16.gmra.mrb[0].mxu0 %v583
    %v1800 = vpop.f32.mrb[0].mxu0
    %v1801 = vadd.f32 %v1704, %v1800
    %v1802 = vpop.f32.mrb[0].mxu0
    %v1803 = vpop.f32.mrb[0].mxu0
    %v1804 = vadd.f32 %v1707, %v1803
    %v1805 = vpop.f32.mrb[0].mxu0
    %1806 = vdwg.mxu0
    %v1807 = vmax.f32 %v1745, %v1748
    %v1808 = vrot.slane %v1807, 4
    %v1809 = vmax.f32 %v1807, %v1808
    %v1810 = vrot.slane %v1809, 2
    %v1811 = vmax.f32 %v1809, %v1810
    %v1812 = vrot.slane %v1811, 1
    %v1813 = vmax.f32 %v1811, %v1812
    %v1814 = vmax.f32 %v1753, %v1756
    %v1815 = vrot.slane %v1814, 4
    %v1816 = vmax.f32 %v1814, %v1815
    %v1817 = vrot.slane %v1816, 2
    %v1818 = vmax.f32 %v1816, %v1817
    %v1819 = vrot.slane %v1818, 1
    %v1820 = vmax.f32 %v1818, %v1819
    %v1821 = vmax.f32 %v1761, %v1764
    %v1822 = vrot.slane %v1821, 4
    %v1823 = vmax.f32 %v1821, %v1822
    %v1824 = vrot.slane %v1823, 2
    %v1825 = vmax.f32 %v1823, %v1824
    %v1826 = vrot.slane %v1825, 1
    %v1827 = vmax.f32 %v1825, %v1826
    %v1828 = vmax.f32 %v1769, %v1772
    %v1829 = vrot.slane %v1828, 4
    %v1830 = vmax.f32 %v1828, %v1829
    %v1831 = vrot.slane %v1830, 2
    %v1832 = vmax.f32 %v1830, %v1831
    %v1833 = vrot.slane %v1832, 1
    %v1834 = vmax.f32 %v1832, %v1833
    %v1835 = vmax.f32 %v1777, %v1780
    %v1836 = vrot.slane %v1835, 4
    %v1837 = vmax.f32 %v1835, %v1836
    %v1838 = vrot.slane %v1837, 2
    %v1839 = vmax.f32 %v1837, %v1838
    %v1840 = vrot.slane %v1839, 1
    %v1841 = vmax.f32 %v1839, %v1840
    %v1842 = vmax.f32 %v1785, %v1788
    %v1843 = vrot.slane %v1842, 4
    %v1844 = vmax.f32 %v1842, %v1843
    %v1845 = vrot.slane %v1844, 2
    %v1846 = vmax.f32 %v1844, %v1845
    %v1847 = vrot.slane %v1846, 1
    %v1848 = vmax.f32 %v1846, %v1847
    %v1849 = vmax.f32 %v1793, %v1796
    %v1850 = vrot.slane %v1849, 4
    %v1851 = vmax.f32 %v1849, %v1850
    %v1852 = vrot.slane %v1851, 2
    %v1853 = vmax.f32 %v1851, %v1852
    %v1854 = vrot.slane %v1853, 1
    %v1855 = vmax.f32 %v1853, %v1854
    %v1856 = vmax.f32 %v1801, %v1804
    %v1857 = vrot.slane %v1856, 4
    %v1858 = vmax.f32 %v1856, %v1857
    %v1859 = vrot.slane %v1858, 2
    %v1860 = vmax.f32 %v1858, %v1859
    %v1861 = vrot.slane %v1860, 1
    %v1862 = vmax.f32 %v1860, %v1861
    %v1863 = vld [vmem:[%s2] sm:$0x1]
    %v1865 = vlaneseq
    %v1866 = vshrl.u32 %v1865, 7
    %v1867 = vsub.s32 0, %v1866
    %v1868 = vrot.slane %v1863, %v1867
    %v1870 = vadd.f32 %v1813, %v1868
    %v1871 = vadd.f32 %v1820, %v1868
    %v1872 = vadd.f32 %v1827, %v1868
    %v1873 = vadd.f32 %v1834, %v1868
    %v1874 = vadd.f32 %v1841, %v1868
    %v1875 = vadd.f32 %v1848, %v1868
    %v1876 = vadd.f32 %v1855, %v1868
    %v1877 = vadd.f32 %v1862, %v1868
    %v1878 = vmax.f32 %v1870, 0.0
    %v1879 = vmax.f32 %v1871, 0.0
    %v1880 = vmax.f32 %v1872, 0.0
    %v1881 = vmax.f32 %v1873, 0.0
    %v1882 = vmax.f32 %v1874, 0.0
    %v1883 = vmax.f32 %v1875, 0.0
    %v1884 = vmax.f32 %v1876, 0.0
    %v1885 = vmax.f32 %v1877, 0.0
    %v1894 = vrot.slane %v1879, 7
    %vm1895 = vcmask 1041409
    %v1896 = vsel %vm1895, %v1894, %v1878
    %v1897 = vrot.slane %v1880, 6
    %vm1898 = vcmask 1042434
    %v1899 = vsel %vm1898, %v1897, %v1896
    %v1900 = vrot.slane %v1881, 5
    %vm1901 = vcmask 1043459
    %v1902 = vsel %vm1901, %v1900, %v1899
    %v1903 = vrot.slane %v1882, 4
    %vm1904 = vcmask 1044484
    %v1905 = vsel %vm1904, %v1903, %v1902
    %v1906 = vrot.slane %v1883, 3
    %vm1907 = vcmask 1045509
    %v1908 = vsel %vm1907, %v1906, %v1905
    %v1909 = vrot.slane %v1884, 2
    %vm1910 = vcmask 1046534
    %v1911 = vsel %vm1910, %v1909, %v1908
    %v1912 = vrot.slane %v1885, 1
    %vm1913 = vcmask 1047559
    %v1914 = vsel %vm1913, %v1912, %v1911
    %1916 = vst [vmem:[#allocation5] sm:$0xff] %v1914
    // Predicated region
    $region18: #{tpu_custom_call.1} parent=1 // pred_check
      _
    $region19: #{tpu_custom_call.1} parent=1 // pred_check_branch
      %1918 = sbr.rel (0) target = $region21
    $region20: #{tpu_custom_call.1} parent=1 // pred_region
      %s1920 = ssub.s32 128, 128
      %1921 = vsyncadd [#allocation4], %s1920
      %s1923 = sshll.u32 [#allocation5], 4
      %s1924 = int_to_ptr.vmem [resolvable:$true] %s1923
      %1926 = dma.vmem_to_hbm [thread:$0]  %s1924, 128, %s3, [#allocation4]
    $region21: #{tpu_custom_call.1} parent=1 // pred_fallthru
      _
    // Predicated region
    $region22: #{tpu_custom_call.1} parent=1 // pred_check
      _
    $region23: #{tpu_custom_call.1} parent=1 // pred_check_branch
      %1928 = sbr.rel (0) target = $region25
    $region24: #{tpu_custom_call.1} parent=1 // pred_region
      %1929 = dma.done [#allocation4], 128
    $region25: #{tpu_custom_call.1} parent=1 // pred_fallthru
      _
    %1930 = vsyncpa [#allocation3], 1
    %1931 = vsyncpa [#allocation4], 1

</llo_original>
